<compile_context>
chip_gen: v6e
topology: v6e:2x2x1
jax: 0.10.0
libtpu: 0.0.40
codegen_flags: <defaults>
</compile_context>

<pallas_src>
import math
import functools

import jax
import jax.numpy as jnp
from jax.experimental import pallas as pl
from jax.experimental.pallas import tpu as pltpu


_INV_SQRT2 = 1.0 / math.sqrt(2.0)


def _lora_mlp_kernel(x_ref, u1_ref, wfc_ref, bfc_ref, b1_ref,
                     wproj_ref, bproj_ref, a2_ref, b2_ref,
                     out_ref, *scratch, acc_in_out):
    """One (token-tile i, hidden-slab h) grid step.

      x_ref     (TM, D)   token tile (resident across the hidden axis)
      u1_ref    (TM, r)   x @ a1, precomputed in the wrapper (f32)
      wfc_ref   (TH, D)   c_fc weight slab, hidden-major (contiguous HBM rows)
      bfc_ref   (1, TH)   c_fc bias slab (f32)
      b1_ref    (r, TH)   LoRA-1 B slab
      wproj_ref (TH, D)   c_proj weight slab, (in, out) layout (contiguous)
      bproj_ref (1, D)    c_proj bias (f32, full)
      a2_ref    (TH, r)   LoRA-2 A slab
      b2_ref    (r, D)    LoRA-2 B (full)
      out_ref   (TM, D)   output tile (resident across h, written at last h)
      scratch:  u2 (TM, r) f32   [+ acc (TM, D) f32 when out dtype != f32]
    """
    if acc_in_out:
        (u2_ref,) = scratch
        acc_ref = out_ref               # f32 output doubles as the accumulator
    else:
        u2_ref, acc_ref = scratch

    h = pl.program_id(1)
    nh = pl.num_programs(1)

    @pl.when(h == 0)
    def _init():
        # Fold the c_proj bias into the accumulator init (added exactly once).
        acc_ref[...] = jnp.broadcast_to(
            bproj_ref[...], acc_ref.shape).astype(acc_ref.dtype)
        u2_ref[...] = jnp.zeros_like(u2_ref)

    # ---- first projection on this hidden slab: c_fc(x) + b1(a1(x)) + bias ----
    # w_fc slab is hidden-major (TH, D): contract dim 1 with dim 1 so the HBM
    # DMA of the slab is fully contiguous (TH rows of D elements each).
    res_1 = jax.lax.dot_general(
        x_ref[...], wfc_ref[...],
        dimension_numbers=(((1,), (1,)), ((), ())),
        preferred_element_type=jnp.float32)
    res_1 = res_1 + jnp.dot(u1_ref[...].astype(b1_ref.dtype), b1_ref[...],
                            preferred_element_type=jnp.float32)
    res_1 = res_1 + bfc_ref[...]

    # ---- exact (erf-based) GELU, matching torch.nn.GELU() default ----
    act = 0.5 * res_1 * (1.0 + jax.lax.erf(res_1 * jnp.float32(_INV_SQRT2)))
    # Feed the MXU in the weight dtype (bf16 => ~2x throughput); acc stays f32.
    act = act.astype(wproj_ref.dtype)

    # ---- second projection: accumulate partial sums over the hidden axis ----
    acc_ref[...] += jnp.dot(act, wproj_ref[...],
                            preferred_element_type=jnp.float32)
    # NOTE: the rank-r side matmul could also be fused as 128-padded extra
    # columns of the w_proj slab; kept separate here to avoid a per-call
    # weight-repack pass over w_proj in HBM (cost ~256/D of the main matmul).
    u2_ref[...] += jnp.dot(act, a2_ref[...],
                           preferred_element_type=jnp.float32)

    @pl.when(h == nh - 1)
    def _finalize():
        lora_2 = jnp.dot(u2_ref[...].astype(b2_ref.dtype), b2_ref[...],
                         preferred_element_type=jnp.float32)
        out_ref[...] = (acc_ref[...].astype(jnp.float32)
                        + lora_2).astype(out_ref.dtype)


def _round_up(x, m):
    return ((x + m - 1) // m) * m


def _sublane_multiple(dtype):
    """Second-minor packing granule: 8 (4-byte), 16 (2-byte), 32 (1-byte)."""
    return max(8, 32 // jnp.dtype(dtype).itemsize)


def _valid_hidden_tiles(H):
    """Descending list of legal hidden-slab sizes (divide H, lane-aligned)."""
    if H % 128 == 0:
        tiles = [t for t in range(128, H + 1, 128) if H % t == 0]
    else:
        tiles = [H]
    return sorted(set(tiles), reverse=True)


def _tpu_vmem_budget_bytes(user_limit):
    """Generation-aware VMEM budget: v5e/v6e (128 MiB phys) vs v7x (64 MiB)."""
    if user_limit is not None:
        return int(user_limit)
    try:
        phys = int(pltpu.get_tpu_info().vmem_capacity_bytes)
    except Exception:
        phys = 64 * 1024 * 1024                  # conservative fallback
    if phys >= 128 * 1024 * 1024:
        return 100 * 1024 * 1024                 # v5e / v6e: use the headroom
    return min(48 * 1024 * 1024, (phys * 3) // 4)  # v7x: 64 MiB per core


def _vmem_footprint(tm, th, D, r, x_bytes, w_bytes, out_bytes,
                    acc_in_out, weight_buffers):
    """Rough VMEM bytes for the chosen tiles (double-buffered pipeline)."""
    f = 2 * tm * D * x_bytes                              # x tile
    f += 2 * tm * r * 4                                   # u1 tile (f32)
    f += 2 * weight_buffers * th * D * w_bytes            # w_fc + w_proj slabs
    f += 2 * (th * 4 + r * th * w_bytes + D * 4
              + th * r * w_bytes + r * D * w_bytes)       # small operands
    f += 2 * tm * D * out_bytes                           # output tile
    f += tm * r * 4                                       # u2 scratch
    if not acc_in_out:
        f += tm * D * 4                                   # f32 acc scratch
    return f


@functools.partial(jax.jit,
                   static_argnames=("tm", "th", "vmem_limit_bytes",
                                    "weight_buffers"))
def lora_mlp_forward(x, w_fc, b_fc, a1, b1, w_proj, b_proj, a2, b2,
                     *, tm=512, th=1024, vmem_limit_bytes=None,
                     weight_buffers=2):
    """Fused LoRA-MLP forward.

    Layouts (all hidden-major weight slabs are contiguous in HBM):
      x      : (B, N, D)
      w_fc   : (H, D)   == torch c_fc.weight
      b_fc   : (H,)
      a1     : (D, r)   == torch linear_a_1.weight.T
      b1     : (r, H)   == torch linear_b_1.weight.T
      w_proj : (H, D)   == torch c_proj.weight.T   (in, out)
      b_proj : (D,)
      a2     : (H, r)   == torch linear_a_2.weight.T
      b2     : (r, D)   == torch linear_b_2.weight.T
    """
    B, N, D = x.shape
    H, D2 = w_fc.shape
    assert D2 == D and w_proj.shape == (H, D)
    r = a1.shape[1]
    M = B * N
    out_dtype = x.dtype
    acc_in_out = (jnp.dtype(out_dtype) == jnp.dtype(jnp.float32))

    sub = _sublane_multiple(x.dtype)

    # ---- token tile (weight-reuse factor) ----
    tm_eff = _round_up(min(tm, _round_up(M, sub)), sub)
    # Megacore guard: keep >= 2 token tiles so the 'parallel' axis can shard
    # across both TensorCores on megacore parts (v7x).
    while _round_up(M, tm_eff) // tm_eff < 2 and tm_eff > sub:
        tm_eff = _round_up(max(sub, tm_eff // 2), sub)

    # ---- hidden slab (streamed reduction axis of c_proj) ----
    tiles = _valid_hidden_tiles(H)
    th_eff = next((t for t in tiles if t <= th), tiles[-1])

    # ---- fit tiles to the per-generation VMEM budget ----
    budget = _tpu_vmem_budget_bytes(vmem_limit_bytes)
    xb = jnp.dtype(x.dtype).itemsize
    wb = jnp.dtype(w_fc.dtype).itemsize
    ob = jnp.dtype(out_dtype).itemsize
    cap = (budget * 9) // 10  # headroom for compiler-internal scratch

    def fits(tm_, th_):
        return _vmem_footprint(tm_, th_, D, r, xb, wb, ob,
                               acc_in_out, weight_buffers) <= cap

    while not fits(tm_eff, th_eff):
        smaller_th = [t for t in tiles if t < th_eff]
        if smaller_th and th_eff > 256:     # shrink th first (keeps weight reuse)
            th_eff = smaller_th[0]
        elif tm_eff > 2 * sub:
            tm_eff = _round_up(tm_eff // 2, sub)
        elif smaller_th:
            th_eff = smaller_th[0]
        else:
            break

    # ---- avoid the x pad copy when a nearby tile divides M exactly ----
    if M % tm_eff != 0:
        for cand in range(tm_eff - sub, max(sub, tm_eff // 2) - 1, -sub):
            if M % cand == 0:
                tm_eff = cand
                break

    assert H % th_eff == 0, "hidden size must be divisible by the hidden tile"

    Mp = _round_up(M, tm_eff)
    x2d = x.reshape(M, D)
    if Mp != M:
        x2d = jnp.pad(x2d, ((0, Mp - M), (0, 0)))

    # LoRA-1 down-projection hoisted out of the kernel: one tall-skinny
    # (M, D) @ (D, r) GEMM done by XLA instead of once per token tile.
    u1 = jnp.dot(x2d, a1, preferred_element_type=jnp.float32)

    # Biases as f32 rows for lane-wise broadcast (negligible bytes).
    b_fc_row = b_fc.reshape(1, H).astype(jnp.float32)
    b_proj_row = b_proj.reshape(1, D).astype(jnp.float32)

    grid = (Mp // tm_eff, H // th_eff)

    def _wspec(index_map):
        # Deeper prefetch on the two streamed weight slabs only (optional).
        if weight_buffers > 2:
            return pl.BlockSpec((th_eff, D), index_map,
                                pipeline_mode=pl.Buffered(weight_buffers))
        return pl.BlockSpec((th_eff, D), index_map)

    scratch = [pltpu.VMEM((tm_eff, r), jnp.float32)]          # u2 = act @ a2
    if not acc_in_out:
        scratch.append(pltpu.VMEM((tm_eff, D), jnp.float32))  # f32 accumulator

    nbytes = lambda a: a.size * a.dtype.itemsize
    weight_stream = (nbytes(w_fc) + nbytes(w_proj) + nbytes(b1) + nbytes(a2)
                     + nbytes(b2) + nbytes(b_fc_row) + nbytes(b_proj_row))
    cost = pl.CostEstimate(
        flops=2 * M * (2 * D * H + 2 * r * H + r * D),
        transcendentals=M * H,
        bytes_accessed=(nbytes(x2d) + nbytes(u1) + Mp * D * ob
                        + grid[0] * weight_stream),
    )

    out2d = pl.pallas_call(
        functools.partial(_lora_mlp_kernel, acc_in_out=acc_in_out),
        out_shape=jax.ShapeDtypeStruct((Mp, D), out_dtype),
        grid_spec=pltpu.PrefetchScalarGridSpec(
            num_scalar_prefetch=0,
            grid=grid,
            in_specs=[
                pl.BlockSpec((tm_eff, D), lambda i, h: (i, 0)),   # x tile
                pl.BlockSpec((tm_eff, r), lambda i, h: (i, 0)),   # u1 tile
                _wspec(lambda i, h: (h, 0)),                      # w_fc slab
                pl.BlockSpec((1, th_eff), lambda i, h: (0, h)),   # b_fc slab
                pl.BlockSpec((r, th_eff), lambda i, h: (0, h)),   # b1 slab
                _wspec(lambda i, h: (h, 0)),                      # w_proj slab
                pl.BlockSpec((1, D),      lambda i, h: (0, 0)),   # b_proj
                pl.BlockSpec((th_eff, r), lambda i, h: (h, 0)),   # a2 slab
                pl.BlockSpec((r, D),      lambda i, h: (0, 0)),   # b2 (full)
            ],
            out_specs=pl.BlockSpec((tm_eff, D), lambda i, h: (i, 0)),
            scratch_shapes=scratch,
        ),
        compiler_params=pltpu.CompilerParams(
            dimension_semantics=("parallel", "arbitrary"),
            vmem_limit_bytes=int(budget),
        ),
        cost_estimate=cost,
    )(x2d, u1, w_fc, b_fc_row, b1, w_proj, b_proj_row, a2, b2)

    return out2d[:M].reshape(B, N, D)


def _reference(x, w_fc, b_fc, a1, b1, w_proj, b_proj, a2, b2):
    """Plain-JAX reference mirroring the PyTorch forward (and kernel casts)."""
    B, N, D = x.shape
    xf = x.reshape(B * N, D)
    res_1 = jnp.dot(xf, w_fc.T, preferred_element_type=jnp.float32)
    u1 = jnp.dot(xf, a1, preferred_element_type=jnp.float32)
    res_1 = res_1 + jnp.dot(u1.astype(b1.dtype), b1,
                            preferred_element_type=jnp.float32)
    res_1 = res_1 + b_fc.astype(jnp.float32)[None, :]
    act = 0.5 * res_1 * (1.0 + jax.lax.erf(res_1 * jnp.float32(_INV_SQRT2)))
    act = act.astype(w_proj.dtype)
    res_2 = jnp.dot(act, w_proj, preferred_element_type=jnp.float32)
    res_2 = res_2 + b_proj.astype(jnp.float32)[None, :]
    u2 = jnp.dot(act, a2, preferred_element_type=jnp.float32)
    res_2 = res_2 + jnp.dot(u2.astype(b2.dtype), b2,
                            preferred_element_type=jnp.float32)
    return res_2.reshape(B, N, D).astype(x.dtype)


if __name__ == "__main__":
    # Small-but-representative shapes: D -> 4D MLP, LoRA rank 4.
    # N=100 makes M=200 tokens, exercising the pad-to-tile path (tm=128 -> 256).
    B, N, D, r = 2, 100, 128, 4
    H = 4 * D  # 512

    key = jax.random.PRNGKey(0)
    ks = jax.random.split(key, 9)

    x = jax.random.normal(ks[0], (B, N, D), dtype=jnp.float32)
    # Hidden-major weight layouts (see lora_mlp_forward docstring).
    w_fc   = jax.random.normal(ks[1], (H, D), dtype=jnp.float32) / math.sqrt(D)
    b_fc   = jax.random.normal(ks[2], (H,),   dtype=jnp.float32) * 0.02
    w_proj = jax.random.normal(ks[3], (H, D), dtype=jnp.float32) / math.sqrt(H)
    b_proj = jax.random.normal(ks[4], (D,),   dtype=jnp.float32) * 0.02
    a1 = jax.random.normal(ks[5], (D, r), dtype=jnp.float32) / math.sqrt(D)
    b1 = jax.random.normal(ks[6], (r, H), dtype=jnp.float32) * 0.01
    a2 = jax.random.normal(ks[7], (H, r), dtype=jnp.float32) / math.sqrt(H)
    b2 = jax.random.normal(ks[8], (r, D), dtype=jnp.float32) * 0.01
    params = (w_fc, b_fc, a1, b1, w_proj, b_proj, a2, b2)

    # f32 path (accumulates directly into the f32 output tile).
    out_f32 = jax.block_until_ready(
        lora_mlp_forward(x, *params, tm=128, th=256))
    ref_f32 = _reference(x, *params)
    assert out_f32.shape == (B, N, D)
    assert jnp.allclose(out_f32, ref_f32, atol=1e-4, rtol=1e-4), \
        "f32 mismatch vs reference"

    # bf16 path (bf16 MXU inputs, f32 accumulation in VMEM scratch).
    to_bf16 = lambda a: a.astype(jnp.bfloat16)
    x16 = to_bf16(x)
    params16 = tuple(to_bf16(p) for p in params)
    out_bf16 = jax.block_until_ready(
        lora_mlp_forward(x16, *params16, tm=128, th=256))
    ref_bf16 = _reference(x16, *params16)
    assert jnp.allclose(out_bf16.astype(jnp.float32),
                        ref_bf16.astype(jnp.float32),
                        atol=2e-2, rtol=2e-2), "bf16 mismatch vs reference"

    print("KERNEL_OK")
</pallas_src>

<mosaic_0001>
module attributes {stable_mosaic.version = 11 : i64} {
  func.func @_lora_mlp_kernel(%arg0: i32, %arg1: i32, %arg2: memref<128x128xf32, #tpu.memory_space<vmem>>, %arg3: memref<128x4xf32, #tpu.memory_space<vmem>>, %arg4: memref<256x128xf32, #tpu.memory_space<vmem>>, %arg5: memref<1x256xf32, #tpu.memory_space<vmem>>, %arg6: memref<4x256xf32, #tpu.memory_space<vmem>>, %arg7: memref<256x128xf32, #tpu.memory_space<vmem>>, %arg8: memref<1x128xf32, #tpu.memory_space<vmem>>, %arg9: memref<256x4xf32, #tpu.memory_space<vmem>>, %arg10: memref<4x128xf32, #tpu.memory_space<vmem>>, %arg11: memref<128x128xf32, #tpu.memory_space<vmem>>, %arg12: memref<128x4xf32, #tpu.memory_space<vmem>>) attributes {dimension_semantics = [#tpu.dimension_semantics<parallel>, #tpu.dimension_semantics<arbitrary>], iteration_bounds = array<i64: 2, 2>, scalar_prefetch = 0 : i64, scratch_operands = 1 : i64, tpu.core_type = #tpu.core_type<tc>, window_params = [{transform_indices = @transform_0, window_bounds = array<i64: 128, 128>}, {transform_indices = @transform_1, window_bounds = array<i64: 128, 4>}, {transform_indices = @transform_2, window_bounds = array<i64: 256, 128>}, {transform_indices = @transform_3, window_bounds = array<i64: 1, 256>}, {transform_indices = @transform_4, window_bounds = array<i64: 4, 256>}, {transform_indices = @transform_5, window_bounds = array<i64: 256, 128>}, {pipeline_mode = #tpu.pipeline_mode<synchronous>, transform_indices = @transform_6, window_bounds = array<i64: 1, 128>}, {transform_indices = @transform_7, window_bounds = array<i64: 256, 4>}, {pipeline_mode = #tpu.pipeline_mode<synchronous>, transform_indices = @transform_8, window_bounds = array<i64: 4, 128>}, {transform_indices = @transform_9, window_bounds = array<i64: 128, 128>}]} {
    %c0_i32 = arith.constant 0 : i32
    %0 = arith.cmpi eq, %arg1, %c0_i32 : i32
    %1 = arith.extui %0 : i1 to i32
    %c0_i32_0 = arith.constant 0 : i32
    %2 = arith.cmpi ne, %1, %c0_i32_0 : i32
    scf.if %2 {
      %c0_29 = arith.constant 0 : index
      %c0_30 = arith.constant 0 : index
      %34 = vector.load %arg8[%c0_29, %c0_30] : memref<1x128xf32, #tpu.memory_space<vmem>>, vector<1x128xf32>
      %35 = vector.shape_cast %34 : vector<1x128xf32> to vector<1x128xf32>
      %36 = vector.broadcast %35 : vector<1x128xf32> to vector<128x128xf32>
      %c0_31 = arith.constant 0 : index
      %c0_32 = arith.constant 0 : index
      %37 = vector.load %arg11[%c0_31, %c0_32] : memref<128x128xf32, #tpu.memory_space<vmem>>, vector<128x128xf32>
      tpu.vector_store %arg11[%c0_31, %c0_32], %36 {strides = array<i32>} : memref<128x128xf32, #tpu.memory_space<vmem>>, vector<128x128xf32>,
      %cst_33 = arith.constant 0.000000e+00 : f32
      %38 = vector.broadcast %cst_33 : f32 to vector<128x4xf32>
      %c0_34 = arith.constant 0 : index
      %c0_35 = arith.constant 0 : index
      %39 = vector.load %arg12[%c0_34, %c0_35] : memref<128x4xf32, #tpu.memory_space<vmem>>, vector<128x4xf32>
      tpu.vector_store %arg12[%c0_34, %c0_35], %38 {strides = array<i32>} : memref<128x4xf32, #tpu.memory_space<vmem>>, vector<128x4xf32>,
    } else {
    }
    %c0 = arith.constant 0 : index
    %c0_1 = arith.constant 0 : index
    %3 = vector.load %arg2[%c0, %c0_1] : memref<128x128xf32, #tpu.memory_space<vmem>>, vector<128x128xf32>
    %c0_2 = arith.constant 0 : index
    %c0_3 = arith.constant 0 : index
    %4 = vector.load %arg4[%c0_2, %c0_3] : memref<256x128xf32, #tpu.memory_space<vmem>>, vector<256x128xf32>
    %cst = arith.constant dense<0.000000e+00> : vector<128x256xf32>
    %5 = tpu.matmul %3, %4, %cst {dimension_numbers = #tpu.dot_dimension_numbers<[1], [1], [0], [0], [0, 0, 1, 0], [], []>} : vector<128x128xf32>, vector<256x128xf32>, vector<128x256xf32> -> vector<128x256xf32>
    %c0_4 = arith.constant 0 : index
    %c0_5 = arith.constant 0 : index
    %6 = vector.load %arg3[%c0_4, %c0_5] : memref<128x4xf32, #tpu.memory_space<vmem>>, vector<128x4xf32>
    %c0_6 = arith.constant 0 : index
    %c0_7 = arith.constant 0 : index
    %7 = vector.load %arg6[%c0_6, %c0_7] : memref<4x256xf32, #tpu.memory_space<vmem>>, vector<4x256xf32>
    %cst_8 = arith.constant dense<0.000000e+00> : vector<128x256xf32>
    %8 = tpu.matmul %6, %7, %cst_8 {dimension_numbers = #tpu.dot_dimension_numbers<[1], [0], [0], [1], [0, 0, 1, 1], [], []>} : vector<128x4xf32>, vector<4x256xf32>, vector<128x256xf32> -> vector<128x256xf32>
    %9 = arith.addf %5, %8 : vector<128x256xf32>
    %c0_9 = arith.constant 0 : index
    %c0_10 = arith.constant 0 : index
    %10 = vector.load %arg5[%c0_9, %c0_10] : memref<1x256xf32, #tpu.memory_space<vmem>>, vector<1x256xf32>
    %11 = vector.broadcast %10 : vector<1x256xf32> to vector<128x256xf32>
    %12 = arith.addf %9, %11 : vector<128x256xf32>
    %cst_11 = arith.constant 5.000000e-01 : f32
    %13 = vector.broadcast %cst_11 : f32 to vector<128x256xf32>
    %14 = arith.mulf %13, %12 : vector<128x256xf32>
    %cst_12 = arith.constant 0.707106769 : f32
    %15 = vector.broadcast %cst_12 : f32 to vector<128x256xf32>
    %16 = arith.mulf %12, %15 : vector<128x256xf32>
    %17 = math.erf %16 : vector<128x256xf32>
    %cst_13 = arith.constant 1.000000e+00 : f32
    %18 = vector.broadcast %cst_13 : f32 to vector<128x256xf32>
    %19 = arith.addf %18, %17 : vector<128x256xf32>
    %20 = arith.mulf %14, %19 : vector<128x256xf32>
    %c0_14 = arith.constant 0 : index
    %c0_15 = arith.constant 0 : index
    %21 = vector.load %arg11[%c0_14, %c0_15] : memref<128x128xf32, #tpu.memory_space<vmem>>, vector<128x128xf32>
    %c0_16 = arith.constant 0 : index
    %c0_17 = arith.constant 0 : index
    %22 = vector.load %arg7[%c0_16, %c0_17] : memref<256x128xf32, #tpu.memory_space<vmem>>, vector<256x128xf32>
    %cst_18 = arith.constant dense<0.000000e+00> : vector<128x128xf32>
    %23 = tpu.matmul %20, %22, %cst_18 {dimension_numbers = #tpu.dot_dimension_numbers<[1], [0], [0], [1], [0, 0, 1, 1], [], []>} : vector<128x256xf32>, vector<256x128xf32>, vector<128x128xf32> -> vector<128x128xf32>
    %24 = arith.addf %21, %23 : vector<128x128xf32>
    %c0_19 = arith.constant 0 : index
    %c0_20 = arith.constant 0 : index
    %25 = vector.load %arg11[%c0_19, %c0_20] : memref<128x128xf32, #tpu.memory_space<vmem>>, vector<128x128xf32>
    tpu.vector_store %arg11[%c0_19, %c0_20], %24 {strides = array<i32>} : memref<128x128xf32, #tpu.memory_space<vmem>>, vector<128x128xf32>,
    %c0_21 = arith.constant 0 : index
    %c0_22 = arith.constant 0 : index
    %26 = vector.load %arg12[%c0_21, %c0_22] : memref<128x4xf32, #tpu.memory_space<vmem>>, vector<128x4xf32>
    %c0_23 = arith.constant 0 : index
    %c0_24 = arith.constant 0 : index
    %27 = vector.load %arg9[%c0_23, %c0_24] : memref<256x4xf32, #tpu.memory_space<vmem>>, vector<256x4xf32>
    %cst_25 = arith.constant dense<0.000000e+00> : vector<128x4xf32>
    %28 = tpu.matmul %20, %27, %cst_25 {dimension_numbers = #tpu.dot_dimension_numbers<[1], [0], [0], [1], [0, 0, 1, 1], [], []>} : vector<128x256xf32>, vector<256x4xf32>, vector<128x4xf32> -> vector<128x4xf32>
    %29 = arith.addf %26, %28 : vector<128x4xf32>
    %c0_26 = arith.constant 0 : index
    %c0_27 = arith.constant 0 : index
    %30 = vector.load %arg12[%c0_26, %c0_27] : memref<128x4xf32, #tpu.memory_space<vmem>>, vector<128x4xf32>
    tpu.vector_store %arg12[%c0_26, %c0_27], %29 {strides = array<i32>} : memref<128x4xf32, #tpu.memory_space<vmem>>, vector<128x4xf32>,
    %c1_i32 = arith.constant 1 : i32
    %31 = arith.cmpi eq, %arg1, %c1_i32 : i32
    %32 = arith.extui %31 : i1 to i32
    %c0_i32_28 = arith.constant 0 : i32
    %33 = arith.cmpi ne, %32, %c0_i32_28 : i32
    scf.if %33 {
      %c0_29 = arith.constant 0 : index
      %c0_30 = arith.constant 0 : index
      %34 = vector.load %arg12[%c0_29, %c0_30] : memref<128x4xf32, #tpu.memory_space<vmem>>, vector<128x4xf32>
      %c0_31 = arith.constant 0 : index
      %c0_32 = arith.constant 0 : index
      %35 = vector.load %arg10[%c0_31, %c0_32] : memref<4x128xf32, #tpu.memory_space<vmem>>, vector<4x128xf32>
      %cst_33 = arith.constant dense<0.000000e+00> : vector<128x128xf32>
      %36 = tpu.matmul %34, %35, %cst_33 {dimension_numbers = #tpu.dot_dimension_numbers<[1], [0], [0], [1], [0, 0, 1, 1], [], []>} : vector<128x4xf32>, vector<4x128xf32>, vector<128x128xf32> -> vector<128x128xf32>
      %c0_34 = arith.constant 0 : index
      %c0_35 = arith.constant 0 : index
      %37 = vector.load %arg11[%c0_34, %c0_35] : memref<128x128xf32, #tpu.memory_space<vmem>>, vector<128x128xf32>
      %38 = arith.addf %37, %36 : vector<128x128xf32>
      %c0_36 = arith.constant 0 : index
      %c0_37 = arith.constant 0 : index
      %39 = vector.load %arg11[%c0_36, %c0_37] : memref<128x128xf32, #tpu.memory_space<vmem>>, vector<128x128xf32>
      tpu.vector_store %arg11[%c0_36, %c0_37], %38 {strides = array<i32>} : memref<128x128xf32, #tpu.memory_space<vmem>>, vector<128x128xf32>,
    } else {
    }
    return
  }
  func.func @transform_0(%arg0: i32, %arg1: i32) -> (i32, i32) {
    %c0_i32 = arith.constant 0 : i32
    %c0_i32_0 = arith.constant 0 : i32
    return %arg0, %c0_i32 : i32, i32
  }
  func.func @transform_1(%arg0: i32, %arg1: i32) -> (i32, i32) {
    %c0_i32 = arith.constant 0 : i32
    %c0_i32_0 = arith.constant 0 : i32
    return %arg0, %c0_i32 : i32, i32
  }
  func.func @transform_2(%arg0: i32, %arg1: i32) -> (i32, i32) {
    %c0_i32 = arith.constant 0 : i32
    %c0_i32_0 = arith.constant 0 : i32
    return %arg1, %c0_i32 : i32, i32
  }
  func.func @transform_3(%arg0: i32, %arg1: i32) -> (i32, i32) {
    %c0_i32 = arith.constant 0 : i32
    %c0_i32_0 = arith.constant 0 : i32
    return %c0_i32, %arg1 : i32, i32
  }
  func.func @transform_4(%arg0: i32, %arg1: i32) -> (i32, i32) {
    %c0_i32 = arith.constant 0 : i32
    %c0_i32_0 = arith.constant 0 : i32
    return %c0_i32, %arg1 : i32, i32
  }
  func.func @transform_5(%arg0: i32, %arg1: i32) -> (i32, i32) {
    %c0_i32 = arith.constant 0 : i32
    %c0_i32_0 = arith.constant 0 : i32
    return %arg1, %c0_i32 : i32, i32
  }
  func.func @transform_6(%arg0: i32, %arg1: i32) -> (i32, i32) {
    %c0_i32 = arith.constant 0 : i32
    %c0_i32_0 = arith.constant 0 : i32
    %c0_i32_1 = arith.constant 0 : i32
    return %c0_i32, %c0_i32_0 : i32, i32
  }
  func.func @transform_7(%arg0: i32, %arg1: i32) -> (i32, i32) {
    %c0_i32 = arith.constant 0 : i32
    %c0_i32_0 = arith.constant 0 : i32
    return %arg1, %c0_i32 : i32, i32
  }
  func.func @transform_8(%arg0: i32, %arg1: i32) -> (i32, i32) {
    %c0_i32 = arith.constant 0 : i32
    %c0_i32_0 = arith.constant 0 : i32
    %c0_i32_1 = arith.constant 0 : i32
    return %c0_i32, %c0_i32_0 : i32, i32
  }
  func.func @transform_9(%arg0: i32, %arg1: i32) -> (i32, i32) {
    %c0_i32 = arith.constant 0 : i32
    %c0_i32_0 = arith.constant 0 : i32
    return %arg0, %c0_i32 : i32, i32
  }
}

</mosaic_0001>

<llo_original>
// kernel: lora_mlp_forward.1
$region0: #{lora_mlp_forward.1}
  #allocation0 [shape = 'u32[]', space=smem, size = 0x4, offset = 0x4, fixed_abs, tag = 'smem constant byte address 0x4 - core index']
  #allocation1 [shape = 'u32[144,128]{1,0:T(1,128)}', space=vmem, size = 0x12000, scoped, tag = 'internal scratch']
  #allocation2 [shape = 'f32[128,4]{1,0:T(8,128)}', space=vmem, size = 0x10000, scoped, tag = 'scratch operand']
  %s0 = inlined_call_operand.vmem [shape: f32[256,128], index: 0, kind: input, shape index: {}]
  %s1 = inlined_call_operand.vmem [shape: f32[256,4], index: 1, kind: input, shape index: {}]
  %s2 = inlined_call_operand.vmem [shape: f32[512,128], index: 2, kind: input, shape index: {}]
  %s3 = inlined_call_operand.vmem [shape: f32[1,512], index: 3, kind: input, shape index: {}]
  %s4 = inlined_call_operand.vmem [shape: f32[4,512], index: 4, kind: input, shape index: {}]
  %s5 = inlined_call_operand.vmem [shape: f32[512,128], index: 5, kind: input, shape index: {}]
  %s6 = inlined_call_operand.vmem [shape: f32[1,128], index: 6, kind: input, shape index: {}]
  %s7 = inlined_call_operand.vmem [shape: f32[512,4], index: 7, kind: input, shape index: {}]
  %s8 = inlined_call_operand.vmem [shape: f32[4,128], index: 8, kind: input, shape index: {}]
  %s9 = inlined_call_operand.vmem [shape: f32[256,128], index: 9, kind: output, shape index: {}]
  %s10 = sld [smem:[#allocation0]]
  $region77: #{lora_mlp_forward.1} parent=0
    _
  %s12 = ssub.s32 1, %s10
  %s13 = scalar_select 0, %s12, %s10
  loop: start=0, step=1, limit=6
  $region2: #{lora_mlp_forward.1} parent=0 // loop_pre_header
    _
  $region3: #{lora_mlp_forward.1} parent=0 // loop_header
    %s15 = sphi 0, %s19
    %p16 = scmp.ge.s32.totalorder %s15, 6
    %s22 = sphi 0, %s34
    %s23 = sphi 0, %s30
    %s24 = sphi 0, %s22
    %s25 = sphi 0, %s23
    %s26 = sphi 0, %s24
    %s27 = sphi 0, %s25
    %s37 = sphi 0, %s39
    %s40 = sphi 0, %s37
    %s41 = sphi 0, %s40
    %s57 = sphi 0, %s41
    %s63 = sphi 0, %s65
    %s66 = sphi 0, %s63
    %s67 = sphi 0, %s66
    %s83 = sphi 0, %s67
    %s89 = sphi 0, %s91
    %s92 = sphi 0, %s89
    %s93 = sphi 0, %s92
    %s109 = sphi 0, %s93
    %s115 = sphi 0, %s117
    %s118 = sphi 0, %s115
    %s119 = sphi 0, %s118
    %s135 = sphi 0, %s119
    %s141 = sphi 0, %s143
    %s144 = sphi 0, %s141
    %s145 = sphi 0, %s144
    %s161 = sphi 0, %s145
    %s167 = sphi 0, %s169
    %s170 = sphi 0, %s167
    %s171 = sphi 0, %s170
    %s187 = sphi 0, %s171
    %s191 = sphi 0, %s191
    %s193 = sphi 0, %s191
    %s194 = sphi 0, %s193
    %s208 = sphi 0, %s194
    %s214 = sphi 0, %s216
    %s217 = sphi 0, %s214
    %s218 = sphi 0, %s217
    %s234 = sphi 0, %s218
    %s238 = sphi 0, %s238
    %s240 = sphi 0, %s238
    %s241 = sphi 0, %s240
    %s255 = sphi 0, %s241
    %s261 = sphi 0, %s263
    %s264 = sphi 0, %s261
    %s265 = sphi 0, %s264
    %s281 = sphi 0, %s265
  $region4: #{lora_mlp_forward.1} parent=0 // loop_header_branch
    %18 = sbr.rel (%p16) target = $region8
  $region5: #{lora_mlp_forward.1} parent=0 // loop_body
    %s20 = ssub.s32 %s15, 1
    %s21 = ssub.s32 %s15, 2
    %s28 = sadd.s32 1, %s23
    %p29 = scmp.ge.s32.totalorder %s28, 2
    %s30 = scalar_select %p29, 0, %s28
    %s31 = sadd.s32 1, %s22
    %s32 = scalar_select %p29, %s31, %s22
    %p33 = scmp.ge.s32.totalorder %s32, 2
    %s34 = scalar_select %p33, 0, %s32
    %s35 = ssub.s32 %s22, %s34
    %p36 = scmp.eq.s32.totalorder %s35, 0
    %s38 = sadd.s32 %s37, 1
    %s39 = scalar_select %p36, %s37, %s38
    %p42 = pneg %p36
    %p43 = scmp.eq.s32.totalorder %s15, 3
    %p44 = por %p42, %p43
    %p45 = scmp.ne.s32.totalorder %s37, %s40
    %p46 = scmp.eq.s32.totalorder %s15, 0
    %p47 = por %p45, %p46
    %p48 = scmp.ne.s32.totalorder %s37, %s40
    %p49 = scmp.eq.s32.totalorder %s20, 3
    %p50 = por %p48, %p49
    %p51 = scmp.ne.s32.totalorder %s40, %s41
    %p52 = scmp.eq.s32.totalorder %s20, 0
    %p53 = por %p51, %p52
    %p54 = scmp.ne.s32.totalorder %s40, %s41
    %p55 = scmp.eq.s32.totalorder %s21, 3
    %p56 = por %p54, %p55
    %p58 = scmp.ne.s32.totalorder %s41, %s57
    %p59 = scmp.eq.s32.totalorder %s21, 0
    %p60 = por %p58, %p59
    %s61 = ssub.s32 %s22, %s34
    %p62 = scmp.eq.s32.totalorder %s61, 0
    %s64 = sadd.s32 %s63, 1
    %s65 = scalar_select %p62, %s63, %s64
    %p68 = pneg %p62
    %p69 = scmp.eq.s32.totalorder %s15, 3
    %p70 = por %p68, %p69
    %p71 = scmp.ne.s32.totalorder %s63, %s66
    %p72 = scmp.eq.s32.totalorder %s15, 0
    %p73 = por %p71, %p72
    %p74 = scmp.ne.s32.totalorder %s63, %s66
    %p75 = scmp.eq.s32.totalorder %s20, 3
    %p76 = por %p74, %p75
    %p77 = scmp.ne.s32.totalorder %s66, %s67
    %p78 = scmp.eq.s32.totalorder %s20, 0
    %p79 = por %p77, %p78
    %p80 = scmp.ne.s32.totalorder %s66, %s67
    %p81 = scmp.eq.s32.totalorder %s21, 3
    %p82 = por %p80, %p81
    %p84 = scmp.ne.s32.totalorder %s67, %s83
    %p85 = scmp.eq.s32.totalorder %s21, 0
    %p86 = por %p84, %p85
    %s87 = ssub.s32 %s23, %s30
    %p88 = scmp.eq.s32.totalorder %s87, 0
    %s90 = sadd.s32 %s89, 1
    %s91 = scalar_select %p88, %s89, %s90
    %p94 = pneg %p88
    %p95 = scmp.eq.s32.totalorder %s15, 3
    %p96 = por %p94, %p95
    %p97 = scmp.ne.s32.totalorder %s89, %s92
    %p98 = scmp.eq.s32.totalorder %s15, 0
    %p99 = por %p97, %p98
    %p100 = scmp.ne.s32.totalorder %s89, %s92
    %p101 = scmp.eq.s32.totalorder %s20, 3
    %p102 = por %p100, %p101
    %p103 = scmp.ne.s32.totalorder %s92, %s93
    %p104 = scmp.eq.s32.totalorder %s20, 0
    %p105 = por %p103, %p104
    %p106 = scmp.ne.s32.totalorder %s92, %s93
    %p107 = scmp.eq.s32.totalorder %s21, 3
    %p108 = por %p106, %p107
    %p110 = scmp.ne.s32.totalorder %s93, %s109
    %p111 = scmp.eq.s32.totalorder %s21, 0
    %p112 = por %p110, %p111
    %s113 = ssub.s32 %s23, %s30
    %p114 = scmp.eq.s32.totalorder %s113, 0
    %s116 = sadd.s32 %s115, 1
    %s117 = scalar_select %p114, %s115, %s116
    %p120 = pneg %p114
    %p121 = scmp.eq.s32.totalorder %s15, 3
    %p122 = por %p120, %p121
    %p123 = scmp.ne.s32.totalorder %s115, %s118
    %p124 = scmp.eq.s32.totalorder %s15, 0
    %p125 = por %p123, %p124
    %p126 = scmp.ne.s32.totalorder %s115, %s118
    %p127 = scmp.eq.s32.totalorder %s20, 3
    %p128 = por %p126, %p127
    %p129 = scmp.ne.s32.totalorder %s118, %s119
    %p130 = scmp.eq.s32.totalorder %s20, 0
    %p131 = por %p129, %p130
    %p132 = scmp.ne.s32.totalorder %s118, %s119
    %p133 = scmp.eq.s32.totalorder %s21, 3
    %p134 = por %p132, %p133
    %p136 = scmp.ne.s32.totalorder %s119, %s135
    %p137 = scmp.eq.s32.totalorder %s21, 0
    %p138 = por %p136, %p137
    %s139 = ssub.s32 %s23, %s30
    %p140 = scmp.eq.s32.totalorder %s139, 0
    %s142 = sadd.s32 %s141, 1
    %s143 = scalar_select %p140, %s141, %s142
    %p146 = pneg %p140
    %p147 = scmp.eq.s32.totalorder %s15, 3
    %p148 = por %p146, %p147
    %p149 = scmp.ne.s32.totalorder %s141, %s144
    %p150 = scmp.eq.s32.totalorder %s15, 0
    %p151 = por %p149, %p150
    %p152 = scmp.ne.s32.totalorder %s141, %s144
    %p153 = scmp.eq.s32.totalorder %s20, 3
    %p154 = por %p152, %p153
    %p155 = scmp.ne.s32.totalorder %s144, %s145
    %p156 = scmp.eq.s32.totalorder %s20, 0
    %p157 = por %p155, %p156
    %p158 = scmp.ne.s32.totalorder %s144, %s145
    %p159 = scmp.eq.s32.totalorder %s21, 3
    %p160 = por %p158, %p159
    %p162 = scmp.ne.s32.totalorder %s145, %s161
    %p163 = scmp.eq.s32.totalorder %s21, 0
    %p164 = por %p162, %p163
    %s165 = ssub.s32 %s23, %s30
    %p166 = scmp.eq.s32.totalorder %s165, 0
    %s168 = sadd.s32 %s167, 1
    %s169 = scalar_select %p166, %s167, %s168
    %p172 = pneg %p166
    %p173 = scmp.eq.s32.totalorder %s15, 3
    %p174 = por %p172, %p173
    %p175 = scmp.ne.s32.totalorder %s167, %s170
    %p176 = scmp.eq.s32.totalorder %s15, 0
    %p177 = por %p175, %p176
    %p178 = scmp.ne.s32.totalorder %s167, %s170
    %p179 = scmp.eq.s32.totalorder %s20, 3
    %p180 = por %p178, %p179
    %p181 = scmp.ne.s32.totalorder %s170, %s171
    %p182 = scmp.eq.s32.totalorder %s20, 0
    %p183 = por %p181, %p182
    %p184 = scmp.ne.s32.totalorder %s170, %s171
    %p185 = scmp.eq.s32.totalorder %s21, 3
    %p186 = por %p184, %p185
    %p188 = scmp.ne.s32.totalorder %s171, %s187
    %p189 = scmp.eq.s32.totalorder %s21, 0
    %p190 = por %p188, %p189
    %s192 = sadd.s32 %s191, 1
    %p195 = scmp.eq.s32.totalorder %s15, 3
    %p196 = scmp.ne.s32.totalorder %s191, %s193
    %p197 = scmp.eq.s32.totalorder %s15, 0
    %p198 = por %p196, %p197
    %p199 = scmp.ne.s32.totalorder %s191, %s193
    %p200 = scmp.eq.s32.totalorder %s20, 3
    %p201 = por %p199, %p200
    %p202 = scmp.ne.s32.totalorder %s193, %s194
    %p203 = scmp.eq.s32.totalorder %s20, 0
    %p204 = por %p202, %p203
    %p205 = scmp.ne.s32.totalorder %s193, %s194
    %p206 = scmp.eq.s32.totalorder %s21, 3
    %p207 = por %p205, %p206
    %p209 = scmp.ne.s32.totalorder %s194, %s208
    %p210 = scmp.eq.s32.totalorder %s21, 0
    %p211 = por %p209, %p210
    %s212 = ssub.s32 %s23, %s30
    %p213 = scmp.eq.s32.totalorder %s212, 0
    %s215 = sadd.s32 %s214, 1
    %s216 = scalar_select %p213, %s214, %s215
    %p219 = pneg %p213
    %p220 = scmp.eq.s32.totalorder %s15, 3
    %p221 = por %p219, %p220
    %p222 = scmp.ne.s32.totalorder %s214, %s217
    %p223 = scmp.eq.s32.totalorder %s15, 0
    %p224 = por %p222, %p223
    %p225 = scmp.ne.s32.totalorder %s214, %s217
    %p226 = scmp.eq.s32.totalorder %s20, 3
    %p227 = por %p225, %p226
    %p228 = scmp.ne.s32.totalorder %s217, %s218
    %p229 = scmp.eq.s32.totalorder %s20, 0
    %p230 = por %p228, %p229
    %p231 = scmp.ne.s32.totalorder %s217, %s218
    %p232 = scmp.eq.s32.totalorder %s21, 3
    %p233 = por %p231, %p232
    %p235 = scmp.ne.s32.totalorder %s218, %s234
    %p236 = scmp.eq.s32.totalorder %s21, 0
    %p237 = por %p235, %p236
    %s239 = sadd.s32 %s238, 1
    %p242 = scmp.eq.s32.totalorder %s15, 3
    %p243 = scmp.ne.s32.totalorder %s238, %s240
    %p244 = scmp.eq.s32.totalorder %s15, 0
    %p245 = por %p243, %p244
    %p246 = scmp.ne.s32.totalorder %s238, %s240
    %p247 = scmp.eq.s32.totalorder %s20, 3
    %p248 = por %p246, %p247
    %p249 = scmp.ne.s32.totalorder %s240, %s241
    %p250 = scmp.eq.s32.totalorder %s20, 0
    %p251 = por %p249, %p250
    %p252 = scmp.ne.s32.totalorder %s240, %s241
    %p253 = scmp.eq.s32.totalorder %s21, 3
    %p254 = por %p252, %p253
    %p256 = scmp.ne.s32.totalorder %s241, %s255
    %p257 = scmp.eq.s32.totalorder %s21, 0
    %p258 = por %p256, %p257
    %s259 = ssub.s32 %s22, %s34
    %p260 = scmp.eq.s32.totalorder %s259, 0
    %s262 = sadd.s32 %s261, 1
    %s263 = scalar_select %p260, %s261, %s262
    %p266 = pneg %p260
    %p267 = scmp.eq.s32.totalorder %s15, 3
    %p268 = por %p266, %p267
    %p269 = scmp.ne.s32.totalorder %s261, %s264
    %p270 = scmp.eq.s32.totalorder %s15, 0
    %p271 = por %p269, %p270
    %p272 = scmp.ne.s32.totalorder %s261, %s264
    %p273 = scmp.eq.s32.totalorder %s20, 3
    %p274 = por %p272, %p273
    %p275 = scmp.ne.s32.totalorder %s264, %s265
    %p276 = scmp.eq.s32.totalorder %s20, 0
    %p277 = por %p275, %p276
    %p278 = scmp.ne.s32.totalorder %s264, %s265
    %p279 = scmp.eq.s32.totalorder %s21, 3
    %p280 = por %p278, %p279
    %p282 = scmp.ne.s32.totalorder %s265, %s281
    %p283 = scmp.eq.s32.totalorder %s21, 0
    %p284 = por %p282, %p283
    %p285 = scmp.le.s32.totalorder 1, %s15
    %p286 = scmp.lt.s32.totalorder %s15, 5
    %p287 = pnand %p285, %p286
    %p288 = pneg %p287
    // Predicated region
    $region9: #{lora_mlp_forward.1} parent=5 // pred_check
      _
    $region10: #{lora_mlp_forward.1} parent=5 // pred_check_branch
      %290 = sbr.rel (%p287) target = $region12
    $region11: #{lora_mlp_forward.1} parent=5 // pred_region
      %s291 = ssub.s32 %s15, 1
      // Predicated region
      $region13: #{lora_mlp_forward.1} parent=11 // pred_check
        %p292 = pneg %p204
      $region14: #{lora_mlp_forward.1} parent=11 // pred_check_branch
        %294 = sbr.rel (%p292) target = $region16
      $region15: #{lora_mlp_forward.1} parent=11 // pred_region
        _
      $region16: #{lora_mlp_forward.1} parent=11 // pred_fallthru
        _
      // Predicated region
      $region17: #{lora_mlp_forward.1} parent=11 // pred_check
        %p295 = pneg %p251
      $region18: #{lora_mlp_forward.1} parent=11 // pred_check_branch
        %297 = sbr.rel (%p295) target = $region20
      $region19: #{lora_mlp_forward.1} parent=11 // pred_region
        _
      $region20: #{lora_mlp_forward.1} parent=11 // pred_fallthru
        _
    $region12: #{lora_mlp_forward.1} parent=5 // pred_fallthru
      _
    %p298 = scmp.lt.s32.totalorder %s15, 4
    // Predicated region
    $region21: #{lora_mlp_forward.1} parent=5 // pred_check
      %p299 = pneg %p298
    $region22: #{lora_mlp_forward.1} parent=5 // pred_check_branch
      %301 = sbr.rel (%p299) target = $region24
    $region23: #{lora_mlp_forward.1} parent=5 // pred_region
      // Predicated region
      $region25: #{lora_mlp_forward.1} parent=23 // pred_check
        %p302 = pneg %p47
      $region26: #{lora_mlp_forward.1} parent=23 // pred_check_branch
        %304 = sbr.rel (%p302) target = $region28
      $region27: #{lora_mlp_forward.1} parent=23 // pred_region
        %s305 = smul.u32 16, %s22
        %p306 = scmp.lt.s32.totalorder %s305, 31
        %s307 = scalar_select %p306, %s305, 31
        %s308 = smul.addr %s307, 8
        %s309 = scalar_lea.vmem %s0, %s308
        %s310 = smul.u32 16, %s22
      $region28: #{lora_mlp_forward.1} parent=23 // pred_fallthru
        _
      // Predicated region
      $region29: #{lora_mlp_forward.1} parent=23 // pred_check
        %p311 = pneg %p73
      $region30: #{lora_mlp_forward.1} parent=23 // pred_check_branch
        %313 = sbr.rel (%p311) target = $region32
      $region31: #{lora_mlp_forward.1} parent=23 // pred_region
        %s314 = smul.u32 16, %s22
        %p315 = scmp.lt.s32.totalorder %s314, 31
        %s316 = scalar_select %p315, %s314, 31
        %s317 = smul.addr %s316, 8
        %s318 = scalar_lea.vmem %s1, %s317
        %s319 = smul.u32 16, %s22
      $region32: #{lora_mlp_forward.1} parent=23 // pred_fallthru
        _
      // Predicated region
      $region33: #{lora_mlp_forward.1} parent=23 // pred_check
        %p320 = pneg %p99
      $region34: #{lora_mlp_forward.1} parent=23 // pred_check_branch
        %322 = sbr.rel (%p320) target = $region36
      $region35: #{lora_mlp_forward.1} parent=23 // pred_region
        %s323 = smul.u32 32, %s23
        %p324 = scmp.lt.s32.totalorder %s323, 63
        %s325 = scalar_select %p324, %s323, 63
        %s326 = smul.addr %s325, 8
        %s327 = scalar_lea.vmem %s2, %s326
        %s328 = smul.u32 32, %s23
      $region36: #{lora_mlp_forward.1} parent=23 // pred_fallthru
        _
      // Predicated region
      $region37: #{lora_mlp_forward.1} parent=23 // pred_check
        %p329 = pneg %p125
      $region38: #{lora_mlp_forward.1} parent=23 // pred_check_branch
        %331 = sbr.rel (%p329) target = $region40
      $region39: #{lora_mlp_forward.1} parent=23 // pred_region
        %s332 = smul.u32 2, %s23
        %p333 = scmp.lt.s32.totalorder %s332, 3
        %s334 = scalar_select %p333, %s332, 3
        %s335 = scalar_lea.vmem %s3, %s334
        %s336 = smul.u32 2, %s23
      $region40: #{lora_mlp_forward.1} parent=23 // pred_fallthru
        _
      // Predicated region
      $region41: #{lora_mlp_forward.1} parent=23 // pred_check
        %p337 = pneg %p151
      $region42: #{lora_mlp_forward.1} parent=23 // pred_check_branch
        %339 = sbr.rel (%p337) target = $region44
      $region43: #{lora_mlp_forward.1} parent=23 // pred_region
        %s340 = smul.u32 2, %s23
        %p341 = scmp.lt.s32.totalorder %s340, 3
        %s342 = scalar_select %p341, %s340, 3
        %s343 = smul.addr %s342, 4
        %s344 = scalar_lea.vmem %s4, %s343
        %s345 = smul.u32 2, %s23
      $region44: #{lora_mlp_forward.1} parent=23 // pred_fallthru
        _
      // Predicated region
      $region45: #{lora_mlp_forward.1} parent=23 // pred_check
        %p346 = pneg %p177
      $region46: #{lora_mlp_forward.1} parent=23 // pred_check_branch
        %348 = sbr.rel (%p346) target = $region48
      $region47: #{lora_mlp_forward.1} parent=23 // pred_region
        %s349 = smul.u32 32, %s23
        %p350 = scmp.lt.s32.totalorder %s349, 63
        %s351 = scalar_select %p350, %s349, 63
        %s352 = smul.addr %s351, 8
        %s353 = scalar_lea.vmem %s5, %s352
        %s354 = smul.u32 32, %s23
      $region48: #{lora_mlp_forward.1} parent=23 // pred_fallthru
        _
      // Predicated region
      $region49: #{lora_mlp_forward.1} parent=23 // pred_check
        %p355 = pneg %p224
      $region50: #{lora_mlp_forward.1} parent=23 // pred_check_branch
        %357 = sbr.rel (%p355) target = $region52
      $region51: #{lora_mlp_forward.1} parent=23 // pred_region
        %s358 = smul.u32 32, %s23
        %p359 = scmp.lt.s32.totalorder %s358, 63
        %s360 = scalar_select %p359, %s358, 63
        %s361 = smul.addr %s360, 8
        %s362 = scalar_lea.vmem %s7, %s361
        %s363 = smul.u32 32, %s23
      $region52: #{lora_mlp_forward.1} parent=23 // pred_fallthru
        _
    $region24: #{lora_mlp_forward.1} parent=5 // pred_fallthru
      _
    %p364 = scmp.le.s32.totalorder 1, %s15
    %p365 = scmp.lt.s32.totalorder %s15, 5
    %p366 = pnand %p364, %p365
    %p367 = pneg %p366
    // Predicated region
    $region53: #{lora_mlp_forward.1} parent=5 // pred_check
      _
    $region54: #{lora_mlp_forward.1} parent=5 // pred_check_branch
      %369 = sbr.rel (%p366) target = $region56
    $region55: #{lora_mlp_forward.1} parent=5 // pred_region
      %s370 = ssub.s32 %s15, 1
      %s371 = smul.u32 16, %s24
      %p372 = scmp.lt.s32.totalorder %s371, 31
      %s373 = scalar_select %p372, %s371, 31
      %s374 = smul.addr %s373, 8
      %s375 = scalar_lea.vmem %s0, %s374
      %p376 = pneg %p53
      %p377 = pneg %p50
      %s378 = smul.u32 16, %s24
      %p379 = scmp.lt.s32.totalorder %s378, 31
      %s380 = scalar_select %p379, %s378, 31
      %s381 = smul.addr %s380, 8
      %s382 = scalar_lea.vmem %s1, %s381
      %p383 = pneg %p79
      %p384 = pneg %p76
      %s385 = smul.u32 32, %s25
      %p386 = scmp.lt.s32.totalorder %s385, 63
      %s387 = scalar_select %p386, %s385, 63
      %s388 = smul.addr %s387, 8
      %s389 = scalar_lea.vmem %s2, %s388
      %p390 = pneg %p105
      %p391 = pneg %p102
      %s392 = smul.u32 2, %s25
      %p393 = scmp.lt.s32.totalorder %s392, 3
      %s394 = scalar_select %p393, %s392, 3
      %s395 = scalar_lea.vmem %s3, %s394
      %p396 = pneg %p131
      %p397 = pneg %p128
      %s398 = smul.u32 2, %s25
      %p399 = scmp.lt.s32.totalorder %s398, 3
      %s400 = scalar_select %p399, %s398, 3
      %s401 = smul.addr %s400, 4
      %s402 = scalar_lea.vmem %s4, %s401
      %p403 = pneg %p157
      %p404 = pneg %p154
      %s405 = smul.u32 32, %s25
      %p406 = scmp.lt.s32.totalorder %s405, 63
      %s407 = scalar_select %p406, %s405, 63
      %s408 = smul.addr %s407, 8
      %s409 = scalar_lea.vmem %s5, %s408
      %p410 = pneg %p183
      %p411 = pneg %p180
      %p412 = pneg %p204
      %p413 = pneg %p201
      %s414 = smul.u32 32, %s25
      %p415 = scmp.lt.s32.totalorder %s414, 63
      %s416 = scalar_select %p415, %s414, 63
      %s417 = smul.addr %s416, 8
      %s418 = scalar_lea.vmem %s7, %s417
      %p419 = pneg %p230
      %p420 = pneg %p227
      %p421 = pneg %p251
      %p422 = pneg %p248
      %p423 = pneg %p277
      %p424 = pneg %p274
      %s425 = smul.u32 16, %s24
      %p426 = scmp.lt.s32.totalorder %s425, 31
      %s427 = scalar_select %p426, %s425, 31
      %s428 = smul.addr %s427, 8
      %s429 = scalar_lea.vmem %s9, %s428
      %s430 = smul.u32 16, %s24
      %p431 = scmp.lt.s32.totalorder %s430, 31
      %s432 = scalar_select %p431, %s430, 31
      %s433 = smul.addr %s432, 8
      %s434 = scalar_lea.vmem %s0, %s433
      %s435 = smul.u32 16, %s24
      %s436 = smul.u32 16, %s24
      %p437 = scmp.lt.s32.totalorder %s436, 31
      %s438 = scalar_select %p437, %s436, 31
      %s439 = smul.addr %s438, 8
      %s440 = scalar_lea.vmem %s1, %s439
      %s441 = smul.u32 16, %s24
      %s442 = smul.u32 32, %s25
      %p443 = scmp.lt.s32.totalorder %s442, 63
      %s444 = scalar_select %p443, %s442, 63
      %s445 = smul.addr %s444, 8
      %s446 = scalar_lea.vmem %s2, %s445
      %s447 = smul.u32 32, %s25
      %s448 = smul.u32 2, %s25
      %p449 = scmp.lt.s32.totalorder %s448, 3
      %s450 = scalar_select %p449, %s448, 3
      %s451 = scalar_lea.vmem %s3, %s450
      %s452 = smul.u32 2, %s25
      %s453 = smul.u32 2, %s25
      %p454 = scmp.lt.s32.totalorder %s453, 3
      %s455 = scalar_select %p454, %s453, 3
      %s456 = smul.addr %s455, 4
      %s457 = scalar_lea.vmem %s4, %s456
      %s458 = smul.u32 2, %s25
      %s459 = smul.u32 32, %s25
      %p460 = scmp.lt.s32.totalorder %s459, 63
      %s461 = scalar_select %p460, %s459, 63
      %s462 = smul.addr %s461, 8
      %s463 = scalar_lea.vmem %s5, %s462
      %s464 = smul.u32 32, %s25
      %s465 = smul.u32 32, %s25
      %p466 = scmp.lt.s32.totalorder %s465, 63
      %s467 = scalar_select %p466, %s465, 63
      %s468 = smul.addr %s467, 8
      %s469 = scalar_lea.vmem %s7, %s468
      %s470 = smul.u32 32, %s25
      %s471 = smul.u32 16, %s24
      %p472 = scmp.lt.s32.totalorder %s471, 31
      %s473 = scalar_select %p472, %s471, 31
      %s474 = smul.addr %s473, 8
      %s475 = scalar_lea.vmem %s9, %s474
      %s476 = smul.u32 16, %s24
      %p477 = scmp.eq.s32.totalorder %s25, 0
      // Predicated region
      $region57: #{lora_mlp_forward.1} parent=55 // pred_check
        %p478 = pneg %p477
      $region58: #{lora_mlp_forward.1} parent=55 // pred_check_branch
        %480 = sbr.rel (%p478) target = $region60
      $region59: #{lora_mlp_forward.1} parent=55 // pred_region
        %v481 = vld [vmem:[%s6] sm:$0x1]
        %v483 = vlaneseq
        %v484 = vshrl.u32 %v483, 7
        %v485 = vsub.s32 0, %v484
        %v486 = vrot.slane %v481, %v485
        %488 = vst [vmem:[%s475] sm:$0xff] %v486
        %489 = vst [vmem:[%s475 + $0x8] sm:$0xff] %v486
        %490 = vst [vmem:[%s475 + $0x10] sm:$0xff] %v486
        %491 = vst [vmem:[%s475 + $0x18] sm:$0xff] %v486
        %492 = vst [vmem:[%s475 + $0x20] sm:$0xff] %v486
        %493 = vst [vmem:[%s475 + $0x28] sm:$0xff] %v486
        %494 = vst [vmem:[%s475 + $0x30] sm:$0xff] %v486
        %495 = vst [vmem:[%s475 + $0x38] sm:$0xff] %v486
        %496 = vst [vmem:[%s475 + $0x40] sm:$0xff] %v486
        %497 = vst [vmem:[%s475 + $0x48] sm:$0xff] %v486
        %498 = vst [vmem:[%s475 + $0x50] sm:$0xff] %v486
        %499 = vst [vmem:[%s475 + $0x58] sm:$0xff] %v486
        %500 = vst [vmem:[%s475 + $0x60] sm:$0xff] %v486
        %501 = vst [vmem:[%s475 + $0x68] sm:$0xff] %v486
        %502 = vst [vmem:[%s475 + $0x70] sm:$0xff] %v486
        %503 = vst [vmem:[%s475 + $0x78] sm:$0xff] %v486
        %vm504 = vcmask 31744
        %505 = vst.msk [vmem:[#allocation2] sm:$0xff] %vm504, 0.0
        %506 = vst.msk [vmem:[#allocation2 + $0x8] sm:$0xff] %vm504, 0.0
        %507 = vst.msk [vmem:[#allocation2 + $0x10] sm:$0xff] %vm504, 0.0
        %508 = vst.msk [vmem:[#allocation2 + $0x18] sm:$0xff] %vm504, 0.0
        %509 = vst.msk [vmem:[#allocation2 + $0x20] sm:$0xff] %vm504, 0.0
        %510 = vst.msk [vmem:[#allocation2 + $0x28] sm:$0xff] %vm504, 0.0
        %511 = vst.msk [vmem:[#allocation2 + $0x30] sm:$0xff] %vm504, 0.0
        %512 = vst.msk [vmem:[#allocation2 + $0x38] sm:$0xff] %vm504, 0.0
        %513 = vst.msk [vmem:[#allocation2 + $0x40] sm:$0xff] %vm504, 0.0
        %514 = vst.msk [vmem:[#allocation2 + $0x48] sm:$0xff] %vm504, 0.0
        %515 = vst.msk [vmem:[#allocation2 + $0x50] sm:$0xff] %vm504, 0.0
        %516 = vst.msk [vmem:[#allocation2 + $0x58] sm:$0xff] %vm504, 0.0
        %517 = vst.msk [vmem:[#allocation2 + $0x60] sm:$0xff] %vm504, 0.0
        %518 = vst.msk [vmem:[#allocation2 + $0x68] sm:$0xff] %vm504, 0.0
        %519 = vst.msk [vmem:[#allocation2 + $0x70] sm:$0xff] %vm504, 0.0
        %520 = vst.msk [vmem:[#allocation2 + $0x78] sm:$0xff] %vm504, 0.0
      $region60: #{lora_mlp_forward.1} parent=55 // pred_fallthru
        _
      %v521 = vld [vmem:[%s434] sm:$0xff]
      %v522 = vld [vmem:[%s434 + $0x8] sm:$0xff]
      %v523 = vld [vmem:[%s434 + $0x10] sm:$0xff]
      %v524 = vld [vmem:[%s434 + $0x18] sm:$0xff]
      %v525 = vld [vmem:[%s434 + $0x20] sm:$0xff]
      %v526 = vld [vmem:[%s434 + $0x28] sm:$0xff]
      %v527 = vld [vmem:[%s434 + $0x30] sm:$0xff]
      %v528 = vld [vmem:[%s434 + $0x38] sm:$0xff]
      %v529 = vld [vmem:[%s434 + $0x40] sm:$0xff]
      %v530 = vld [vmem:[%s434 + $0x48] sm:$0xff]
      %v531 = vld [vmem:[%s434 + $0x50] sm:$0xff]
      %v532 = vld [vmem:[%s434 + $0x58] sm:$0xff]
      %v533 = vld [vmem:[%s434 + $0x60] sm:$0xff]
      %v534 = vld [vmem:[%s434 + $0x68] sm:$0xff]
      %v535 = vld [vmem:[%s434 + $0x70] sm:$0xff]
      %v536 = vld [vmem:[%s434 + $0x78] sm:$0xff]
      %v537 = vld [vmem:[%s446] sm:$0xff]
      %v538 = vld [vmem:[%s446 + $0x8] sm:$0xff]
      %v539 = vld [vmem:[%s446 + $0x10] sm:$0xff]
      %v540 = vld [vmem:[%s446 + $0x18] sm:$0xff]
      %v541 = vld [vmem:[%s446 + $0x20] sm:$0xff]
      %v542 = vld [vmem:[%s446 + $0x28] sm:$0xff]
      %v543 = vld [vmem:[%s446 + $0x30] sm:$0xff]
      %v544 = vld [vmem:[%s446 + $0x38] sm:$0xff]
      %v545 = vld [vmem:[%s446 + $0x40] sm:$0xff]
      %v546 = vld [vmem:[%s446 + $0x48] sm:$0xff]
      %v547 = vld [vmem:[%s446 + $0x50] sm:$0xff]
      %v548 = vld [vmem:[%s446 + $0x58] sm:$0xff]
      %v549 = vld [vmem:[%s446 + $0x60] sm:$0xff]
      %v550 = vld [vmem:[%s446 + $0x68] sm:$0xff]
      %v551 = vld [vmem:[%s446 + $0x70] sm:$0xff]
      %v552 = vld [vmem:[%s446 + $0x78] sm:$0xff]
      %v553 = vld [vmem:[%s446 + $0x80] sm:$0xff]
      %v554 = vld [vmem:[%s446 + $0x88] sm:$0xff]
      %v555 = vld [vmem:[%s446 + $0x90] sm:$0xff]
      %v556 = vld [vmem:[%s446 + $0x98] sm:$0xff]
      %v557 = vld [vmem:[%s446 + $0xa0] sm:$0xff]
      %v558 = vld [vmem:[%s446 + $0xa8] sm:$0xff]
      %v559 = vld [vmem:[%s446 + $0xb0] sm:$0xff]
      %v560 = vld [vmem:[%s446 + $0xb8] sm:$0xff]
      %v561 = vld [vmem:[%s446 + $0xc0] sm:$0xff]
      %v562 = vld [vmem:[%s446 + $0xc8] sm:$0xff]
      %v563 = vld [vmem:[%s446 + $0xd0] sm:$0xff]
      %v564 = vld [vmem:[%s446 + $0xd8] sm:$0xff]
      %v565 = vld [vmem:[%s446 + $0xe0] sm:$0xff]
      %v566 = vld [vmem:[%s446 + $0xe8] sm:$0xff]
      %v567 = vld [vmem:[%s446 + $0xf0] sm:$0xff]
      %v568 = vld [vmem:[%s446 + $0xf8] sm:$0xff]
      %v569 = vld [vmem:[%s440] sm:$0xff]
      %v570 = vld [vmem:[%s440 + $0x8] sm:$0xff]
      %v571 = vld [vmem:[%s440 + $0x10] sm:$0xff]
      %v572 = vld [vmem:[%s440 + $0x18] sm:$0xff]
      %v573 = vld [vmem:[%s440 + $0x20] sm:$0xff]
      %v574 = vld [vmem:[%s440 + $0x28] sm:$0xff]
      %v575 = vld [vmem:[%s440 + $0x30] sm:$0xff]
      %v576 = vld [vmem:[%s440 + $0x38] sm:$0xff]
      %v577 = vld [vmem:[%s440 + $0x40] sm:$0xff]
      %v578 = vld [vmem:[%s440 + $0x48] sm:$0xff]
      %v579 = vld [vmem:[%s440 + $0x50] sm:$0xff]
      %v580 = vld [vmem:[%s440 + $0x58] sm:$0xff]
      %v581 = vld [vmem:[%s440 + $0x60] sm:$0xff]
      %v582 = vld [vmem:[%s440 + $0x68] sm:$0xff]
      %v583 = vld [vmem:[%s440 + $0x70] sm:$0xff]
      %v584 = vld [vmem:[%s440 + $0x78] sm:$0xff]
      %v585 = vld [vmem:[%s457] sm:$0xff]
      %v587 = vcombine.high %v585, %v585
      %vm588 = vcmask 31744
      %v590 = vsel %vm588, %v569, 0
      %v593 = vsel %vm588, %v570, 0
      %v596 = vsel %vm588, %v571, 0
      %v599 = vsel %vm588, %v572, 0
      %v602 = vsel %vm588, %v573, 0
      %v605 = vsel %vm588, %v574, 0
      %v608 = vsel %vm588, %v575, 0
      %v611 = vsel %vm588, %v576, 0
      %v614 = vsel %vm588, %v577, 0
      %v617 = vsel %vm588, %v578, 0
      %v620 = vsel %vm588, %v579, 0
      %v623 = vsel %vm588, %v580, 0
      %v626 = vsel %vm588, %v581, 0
      %v629 = vsel %vm588, %v582, 0
      %v632 = vsel %vm588, %v583, 0
      %v635 = vsel %vm588, %v584, 0
      %vm637 = vcmask 1043456
      %v638 = vsel %vm637, %v585, 0
      %v640 = vsel %vm637, %v587, 0
      %642 = vmatprep.subr.mxu0 0.0
      %643 = vmatpush1.msra.mxu0 0.0
      %644 = vmatprep.subr.mxu0 0.0
      %645 = vmatpush1.msra.mxu0 0.0
      %646 = vmatprep.subr.mxu0 0.0
      %647 = vmatpush1.msra.mxu0 0.0
      %648 = vmatprep.subr.mxu0 0.0
      %649 = vmatpush1.msra.mxu0 0.0
      %650 = vmatprep.subr.mxu0 0.0
      %651 = vmatpush1.msra.mxu0 0.0
      %652 = vmatprep.subr.mxu0 0.0
      %653 = vmatpush1.msra.mxu0 0.0
      %654 = vmatprep.subr.mxu0 0.0
      %655 = vmatpush1.msra.mxu0 0.0
      %656 = vmatprep.subr.mxu0 0.0
      %657 = vmatpush1.msra.mxu0 0.0
      %658 = vmatprep.subr.mxu0 0.0
      %659 = vmatpush1.msra.mxu0 0.0
      %660 = vmatprep.subr.mxu0 0.0
      %661 = vmatpush1.msra.mxu0 0.0
      %662 = vmatprep.subr.mxu0 0.0
      %663 = vmatpush1.msra.mxu0 0.0
      %664 = vmatprep.subr.mxu0 0.0
      %665 = vmatpush1.msra.mxu0 0.0
      %666 = vmatprep.subr.mxu0 0.0
      %667 = vmatpush1.msra.mxu0 0.0
      %668 = vmatprep.subr.mxu0 0.0
      %669 = vmatpush1.msra.mxu0 0.0
      %670 = vmatprep.subr.mxu0 0.0
      %671 = vmatpush1.msra.mxu0 0.0
      %672 = vmatprep.subr.mxu0 %v640
      %673 = vmatpush1.msra.mxu0 %v638
      %674 = vmatprep.subr.mxu0 0.0
      %675 = vmatpush2.msra.mxu0 0.0
      %676 = vmatprep.subr.mxu0 0.0
      %677 = vmatpush2.msra.mxu0 0.0
      %678 = vmatprep.subr.mxu0 0.0
      %679 = vmatpush2.msra.mxu0 0.0
      %680 = vmatprep.subr.mxu0 0.0
      %681 = vmatpush2.msra.mxu0 0.0
      %682 = vmatprep.subr.mxu0 0.0
      %683 = vmatpush2.msra.mxu0 0.0
      %684 = vmatprep.subr.mxu0 0.0
      %685 = vmatpush2.msra.mxu0 0.0
      %686 = vmatprep.subr.mxu0 0.0
      %687 = vmatpush2.msra.mxu0 0.0
      %688 = vmatprep.subr.mxu0 0.0
      %689 = vmatpush2.msra.mxu0 0.0
      %690 = vmatprep.subr.mxu0 0.0
      %691 = vmatpush2.msra.mxu0 0.0
      %692 = vmatprep.subr.mxu0 0.0
      %693 = vmatpush2.msra.mxu0 0.0
      %694 = vmatprep.subr.mxu0 0.0
      %695 = vmatpush2.msra.mxu0 0.0
      %696 = vmatprep.subr.mxu0 0.0
      %697 = vmatpush2.msra.mxu0 0.0
      %698 = vmatprep.subr.mxu0 0.0
      %699 = vmatpush2.msra.mxu0 0.0
      %700 = vmatprep.subr.mxu0 0.0
      %701 = vmatpush2.msra.mxu0 0.0
      %702 = vmatprep.subr.mxu0 0.0
      %703 = vmatpush2.msra.mxu0 0.0
      %704 = vmatprep.subr.mxu0 0.0
      %705 = vmatpush2.msra.mxu0 0.0
      %706 = vmatprep.mubr.f32.mxu0 0.0
      %707 = vmatmul.mubr.f32.gmra.mxu0 %v590
      %v708 = vpop.f32.mrf.mxu0
      %v709 = vadd.f32 0.0, %v708
      %v710 = vpop.f32.mrf.mxu0
      %v711 = vadd.f32 0.0, %v710
      %712 = vmatprep.mubr.f32.mxu0 0.0
      %713 = vmatmul.mubr.f32.gmra.mxu0 %v593
      %v714 = vpop.f32.mrf.mxu0
      %v715 = vadd.f32 0.0, %v714
      %v716 = vpop.f32.mrf.mxu0
      %v717 = vadd.f32 0.0, %v716
      %718 = vmatprep.mubr.f32.mxu0 0.0
      %719 = vmatmul.mubr.f32.gmra.mxu0 %v596
      %v720 = vpop.f32.mrf.mxu0
      %v721 = vadd.f32 0.0, %v720
      %v722 = vpop.f32.mrf.mxu0
      %v723 = vadd.f32 0.0, %v722
      %724 = vmatprep.mubr.f32.mxu0 0.0
      %725 = vmatmul.mubr.f32.gmra.mxu0 %v599
      %v726 = vpop.f32.mrf.mxu0
      %v727 = vadd.f32 0.0, %v726
      %v728 = vpop.f32.mrf.mxu0
      %v729 = vadd.f32 0.0, %v728
      %730 = vmatprep.mubr.f32.mxu0 0.0
      %731 = vmatmul.mubr.f32.gmra.mxu0 %v602
      %v732 = vpop.f32.mrf.mxu0
      %v733 = vadd.f32 0.0, %v732
      %v734 = vpop.f32.mrf.mxu0
      %v735 = vadd.f32 0.0, %v734
      %736 = vmatprep.mubr.f32.mxu0 0.0
      %737 = vmatmul.mubr.f32.gmra.mxu0 %v605
      %v738 = vpop.f32.mrf.mxu0
      %v739 = vadd.f32 0.0, %v738
      %v740 = vpop.f32.mrf.mxu0
      %v741 = vadd.f32 0.0, %v740
      %742 = vmatprep.mubr.f32.mxu0 0.0
      %743 = vmatmul.mubr.f32.gmra.mxu0 %v608
      %v744 = vpop.f32.mrf.mxu0
      %v745 = vadd.f32 0.0, %v744
      %v746 = vpop.f32.mrf.mxu0
      %v747 = vadd.f32 0.0, %v746
      %748 = vmatprep.mubr.f32.mxu0 0.0
      %749 = vmatmul.mubr.f32.gmra.mxu0 %v611
      %v750 = vpop.f32.mrf.mxu0
      %v751 = vadd.f32 0.0, %v750
      %v752 = vpop.f32.mrf.mxu0
      %v753 = vadd.f32 0.0, %v752
      %754 = vmatprep.mubr.f32.mxu0 0.0
      %755 = vmatmul.mubr.f32.gmra.mxu0 %v614
      %v756 = vpop.f32.mrf.mxu0
      %v757 = vadd.f32 0.0, %v756
      %v758 = vpop.f32.mrf.mxu0
      %v759 = vadd.f32 0.0, %v758
      %760 = vmatprep.mubr.f32.mxu0 0.0
      %761 = vmatmul.mubr.f32.gmra.mxu0 %v617
      %v762 = vpop.f32.mrf.mxu0
      %v763 = vadd.f32 0.0, %v762
      %v764 = vpop.f32.mrf.mxu0
      %v765 = vadd.f32 0.0, %v764
      %766 = vmatprep.mubr.f32.mxu0 0.0
      %767 = vmatmul.mubr.f32.gmra.mxu0 %v620
      %v768 = vpop.f32.mrf.mxu0
      %v769 = vadd.f32 0.0, %v768
      %v770 = vpop.f32.mrf.mxu0
      %v771 = vadd.f32 0.0, %v770
      %772 = vmatprep.mubr.f32.mxu0 0.0
      %773 = vmatmul.mubr.f32.gmra.mxu0 %v623
      %v774 = vpop.f32.mrf.mxu0
      %v775 = vadd.f32 0.0, %v774
      %v776 = vpop.f32.mrf.mxu0
      %v777 = vadd.f32 0.0, %v776
      %778 = vmatprep.mubr.f32.mxu0 0.0
      %779 = vmatmul.mubr.f32.gmra.mxu0 %v626
      %v780 = vpop.f32.mrf.mxu0
      %v781 = vadd.f32 0.0, %v780
      %v782 = vpop.f32.mrf.mxu0
      %v783 = vadd.f32 0.0, %v782
      %784 = vmatprep.mubr.f32.mxu0 0.0
      %785 = vmatmul.mubr.f32.gmra.mxu0 %v629
      %v786 = vpop.f32.mrf.mxu0
      %v787 = vadd.f32 0.0, %v786
      %v788 = vpop.f32.mrf.mxu0
      %v789 = vadd.f32 0.0, %v788
      %790 = vmatprep.mubr.f32.mxu0 0.0
      %791 = vmatmul.mubr.f32.gmra.mxu0 %v632
      %v792 = vpop.f32.mrf.mxu0
      %v793 = vadd.f32 0.0, %v792
      %v794 = vpop.f32.mrf.mxu0
      %v795 = vadd.f32 0.0, %v794
      %796 = vmatprep.mubr.f32.mxu0 0.0
      %797 = vmatmul.mubr.f32.gmra.mxu0 %v635
      %v798 = vpop.f32.mrf.mxu0
      %v799 = vadd.f32 0.0, %v798
      %v800 = vpop.f32.mrf.mxu0
      %v801 = vadd.f32 0.0, %v800
      %802 = vdwg.mxu0
      %803 = vmatprep.subr.mxu0 0.0
      %804 = vmatpush1.xpose.msra.mxu0 %v552
      %805 = vmatprep.subr.mxu0 0.0
      %806 = vmatpush1.xpose.msra.mxu0 %v551
      %807 = vmatprep.subr.mxu0 0.0
      %808 = vmatpush1.xpose.msra.mxu0 %v550
      %809 = vmatprep.subr.mxu0 0.0
      %810 = vmatpush1.xpose.msra.mxu0 %v549
      %811 = vmatprep.subr.mxu0 0.0
      %812 = vmatpush1.xpose.msra.mxu0 %v548
      %813 = vmatprep.subr.mxu0 0.0
      %814 = vmatpush1.xpose.msra.mxu0 %v547
      %815 = vmatprep.subr.mxu0 0.0
      %816 = vmatpush1.xpose.msra.mxu0 %v546
      %817 = vmatprep.subr.mxu0 0.0
      %818 = vmatpush1.xpose.msra.mxu0 %v545
      %819 = vmatprep.subr.mxu0 0.0
      %820 = vmatpush1.xpose.msra.mxu0 %v544
      %821 = vmatprep.subr.mxu0 0.0
      %822 = vmatpush1.xpose.msra.mxu0 %v543
      %823 = vmatprep.subr.mxu0 0.0
      %824 = vmatpush1.xpose.msra.mxu0 %v542
      %825 = vmatprep.subr.mxu0 0.0
      %826 = vmatpush1.xpose.msra.mxu0 %v541
      %827 = vmatprep.subr.mxu0 0.0
      %828 = vmatpush1.xpose.msra.mxu0 %v540
      %829 = vmatprep.subr.mxu0 0.0
      %830 = vmatpush1.xpose.msra.mxu0 %v539
      %831 = vmatprep.subr.mxu0 0.0
      %832 = vmatpush1.xpose.msra.mxu0 %v538
      %833 = vmatprep.subr.mxu0 0.0
      %834 = vmatpush1.xpose.msra.mxu0 %v537
      %835 = vmatprep.subr.mxu0 0.0
      %836 = vmatpush2.xpose.msra.mxu0 %v568
      %837 = vmatprep.subr.mxu0 0.0
      %838 = vmatpush2.xpose.msra.mxu0 %v567
      %839 = vmatprep.subr.mxu0 0.0
      %840 = vmatpush2.xpose.msra.mxu0 %v566
      %841 = vmatprep.subr.mxu0 0.0
      %842 = vmatpush2.xpose.msra.mxu0 %v565
      %843 = vmatprep.subr.mxu0 0.0
      %844 = vmatpush2.xpose.msra.mxu0 %v564
      %845 = vmatprep.subr.mxu0 0.0
      %846 = vmatpush2.xpose.msra.mxu0 %v563
      %847 = vmatprep.subr.mxu0 0.0
      %848 = vmatpush2.xpose.msra.mxu0 %v562
      %849 = vmatprep.subr.mxu0 0.0
      %850 = vmatpush2.xpose.msra.mxu0 %v561
      %851 = vmatprep.subr.mxu0 0.0
      %852 = vmatpush2.xpose.msra.mxu0 %v560
      %853 = vmatprep.subr.mxu0 0.0
      %854 = vmatpush2.xpose.msra.mxu0 %v559
      %855 = vmatprep.subr.mxu0 0.0
      %856 = vmatpush2.xpose.msra.mxu0 %v558
      %857 = vmatprep.subr.mxu0 0.0
      %858 = vmatpush2.xpose.msra.mxu0 %v557
      %859 = vmatprep.subr.mxu0 0.0
      %860 = vmatpush2.xpose.msra.mxu0 %v556
      %861 = vmatprep.subr.mxu0 0.0
      %862 = vmatpush2.xpose.msra.mxu0 %v555
      %863 = vmatprep.subr.mxu0 0.0
      %864 = vmatpush2.xpose.msra.mxu0 %v554
      %865 = vmatprep.subr.mxu0 0.0
      %866 = vmatpush2.xpose.msra.mxu0 %v553
      %867 = vmatprep.mubr.f32.mxu0 0.0
      %868 = vmatmul.mubr.f32.gmra.mxu0 %v521
      %v869 = vpop.f32.mrf.mxu0
      %v870 = vadd.f32 %v709, %v869
      %v871 = vpop.f32.mrf.mxu0
      %v872 = vadd.f32 %v711, %v871
      %873 = vmatprep.mubr.f32.mxu0 0.0
      %874 = vmatmul.mubr.f32.gmra.mxu0 %v522
      %v875 = vpop.f32.mrf.mxu0
      %v876 = vadd.f32 %v715, %v875
      %v877 = vpop.f32.mrf.mxu0
      %v878 = vadd.f32 %v717, %v877
      %879 = vmatprep.mubr.f32.mxu0 0.0
      %880 = vmatmul.mubr.f32.gmra.mxu0 %v523
      %v881 = vpop.f32.mrf.mxu0
      %v882 = vadd.f32 %v721, %v881
      %v883 = vpop.f32.mrf.mxu0
      %v884 = vadd.f32 %v723, %v883
      %885 = vmatprep.mubr.f32.mxu0 0.0
      %886 = vmatmul.mubr.f32.gmra.mxu0 %v524
      %v887 = vpop.f32.mrf.mxu0
      %v888 = vadd.f32 %v727, %v887
      %v889 = vpop.f32.mrf.mxu0
      %v890 = vadd.f32 %v729, %v889
      %891 = vmatprep.mubr.f32.mxu0 0.0
      %892 = vmatmul.mubr.f32.gmra.mxu0 %v525
      %v893 = vpop.f32.mrf.mxu0
      %v894 = vadd.f32 %v733, %v893
      %v895 = vpop.f32.mrf.mxu0
      %v896 = vadd.f32 %v735, %v895
      %897 = vmatprep.mubr.f32.mxu0 0.0
      %898 = vmatmul.mubr.f32.gmra.mxu0 %v526
      %v899 = vpop.f32.mrf.mxu0
      %v900 = vadd.f32 %v739, %v899
      %v901 = vpop.f32.mrf.mxu0
      %v902 = vadd.f32 %v741, %v901
      %903 = vmatprep.mubr.f32.mxu0 0.0
      %904 = vmatmul.mubr.f32.gmra.mxu0 %v527
      %v905 = vpop.f32.mrf.mxu0
      %v906 = vadd.f32 %v745, %v905
      %v907 = vpop.f32.mrf.mxu0
      %v908 = vadd.f32 %v747, %v907
      %909 = vmatprep.mubr.f32.mxu0 0.0
      %910 = vmatmul.mubr.f32.gmra.mxu0 %v528
      %v911 = vpop.f32.mrf.mxu0
      %v912 = vadd.f32 %v751, %v911
      %v913 = vpop.f32.mrf.mxu0
      %v914 = vadd.f32 %v753, %v913
      %915 = vmatprep.mubr.f32.mxu0 0.0
      %916 = vmatmul.mubr.f32.gmra.mxu0 %v529
      %v917 = vpop.f32.mrf.mxu0
      %v918 = vadd.f32 %v757, %v917
      %v919 = vpop.f32.mrf.mxu0
      %v920 = vadd.f32 %v759, %v919
      %921 = vmatprep.mubr.f32.mxu0 0.0
      %922 = vmatmul.mubr.f32.gmra.mxu0 %v530
      %v923 = vpop.f32.mrf.mxu0
      %v924 = vadd.f32 %v763, %v923
      %v925 = vpop.f32.mrf.mxu0
      %v926 = vadd.f32 %v765, %v925
      %927 = vmatprep.mubr.f32.mxu0 0.0
      %928 = vmatmul.mubr.f32.gmra.mxu0 %v531
      %v929 = vpop.f32.mrf.mxu0
      %v930 = vadd.f32 %v769, %v929
      %v931 = vpop.f32.mrf.mxu0
      %v932 = vadd.f32 %v771, %v931
      %933 = vmatprep.mubr.f32.mxu0 0.0
      %934 = vmatmul.mubr.f32.gmra.mxu0 %v532
      %v935 = vpop.f32.mrf.mxu0
      %v936 = vadd.f32 %v775, %v935
      %v937 = vpop.f32.mrf.mxu0
      %v938 = vadd.f32 %v777, %v937
      %939 = vmatprep.mubr.f32.mxu0 0.0
      %940 = vmatmul.mubr.f32.gmra.mxu0 %v533
      %v941 = vpop.f32.mrf.mxu0
      %v942 = vadd.f32 %v781, %v941
      %v943 = vpop.f32.mrf.mxu0
      %v944 = vadd.f32 %v783, %v943
      %945 = vmatprep.mubr.f32.mxu0 0.0
      %946 = vmatmul.mubr.f32.gmra.mxu0 %v534
      %v947 = vpop.f32.mrf.mxu0
      %v948 = vadd.f32 %v787, %v947
      %v949 = vpop.f32.mrf.mxu0
      %v950 = vadd.f32 %v789, %v949
      %951 = vmatprep.mubr.f32.mxu0 0.0
      %952 = vmatmul.mubr.f32.gmra.mxu0 %v535
      %v953 = vpop.f32.mrf.mxu0
      %v954 = vadd.f32 %v793, %v953
      %v955 = vpop.f32.mrf.mxu0
      %v956 = vadd.f32 %v795, %v955
      %957 = vmatprep.mubr.f32.mxu0 0.0
      %958 = vmatmul.mubr.f32.gmra.mxu0 %v536
      %v959 = vpop.f32.mrf.mxu0
      %v960 = vadd.f32 %v799, %v959
      %v961 = vpop.f32.mrf.mxu0
      %v962 = vadd.f32 %v801, %v961
      %963 = vdwg.mxu0
      %v964 = vld [vmem:[%s451] sm:$0x3]
      %v966 = vlaneseq
      %v967 = vshrl.u32 %v966, 7
      %v968 = vsub.s32 0, %v967
      %v969 = vrot.slane %v964, %v968
      %v970 = vlaneseq
      %v971 = vshrl.u32 %v970, 7
      %v972 = vsub.s32 1, %v971
      %v973 = vrot.slane %v964, %v972
      %v976 = vadd.f32 %v870, %v969
      %v977 = vadd.f32 %v872, %v973
      %v978 = vadd.f32 %v876, %v969
      %v979 = vadd.f32 %v878, %v973
      %v980 = vadd.f32 %v882, %v969
      %v981 = vadd.f32 %v884, %v973
      %v982 = vadd.f32 %v888, %v969
      %v983 = vadd.f32 %v890, %v973
      %v984 = vadd.f32 %v894, %v969
      %v985 = vadd.f32 %v896, %v973
      %v986 = vadd.f32 %v900, %v969
      %v987 = vadd.f32 %v902, %v973
      %v988 = vadd.f32 %v906, %v969
      %v989 = vadd.f32 %v908, %v973
      %v990 = vadd.f32 %v912, %v969
      %v991 = vadd.f32 %v914, %v973
      %v992 = vadd.f32 %v918, %v969
      %v993 = vadd.f32 %v920, %v973
      %v994 = vadd.f32 %v924, %v969
      %v995 = vadd.f32 %v926, %v973
      %v996 = vadd.f32 %v930, %v969
      %v997 = vadd.f32 %v932, %v973
      %v998 = vadd.f32 %v936, %v969
      %v999 = vadd.f32 %v938, %v973
      %v1000 = vadd.f32 %v942, %v969
      %v1001 = vadd.f32 %v944, %v973
      %v1002 = vadd.f32 %v948, %v969
      %v1003 = vadd.f32 %v950, %v973
      %v1004 = vadd.f32 %v954, %v969
      %v1005 = vadd.f32 %v956, %v973
      %v1006 = vadd.f32 %v960, %v969
      %v1007 = vadd.f32 %v962, %v973
      %v1008 = vmul.f32 %v976, 0.5
      %v1009 = vmul.f32 %v977, 0.5
      %v1010 = vmul.f32 %v978, 0.5
      %v1011 = vmul.f32 %v979, 0.5
      %v1012 = vmul.f32 %v980, 0.5
      %v1013 = vmul.f32 %v981, 0.5
      %v1014 = vmul.f32 %v982, 0.5
      %v1015 = vmul.f32 %v983, 0.5
      %v1016 = vmul.f32 %v984, 0.5
      %v1017 = vmul.f32 %v985, 0.5
      %v1018 = vmul.f32 %v986, 0.5
      %v1019 = vmul.f32 %v987, 0.5
      %v1020 = vmul.f32 %v988, 0.5
      %v1021 = vmul.f32 %v989, 0.5
      %v1022 = vmul.f32 %v990, 0.5
      %v1023 = vmul.f32 %v991, 0.5
      %v1024 = vmul.f32 %v992, 0.5
      %v1025 = vmul.f32 %v993, 0.5
      %v1026 = vmul.f32 %v994, 0.5
      %v1027 = vmul.f32 %v995, 0.5
      %v1028 = vmul.f32 %v996, 0.5
      %v1029 = vmul.f32 %v997, 0.5
      %v1030 = vmul.f32 %v998, 0.5
      %v1031 = vmul.f32 %v999, 0.5
      %v1032 = vmul.f32 %v1000, 0.5
      %v1033 = vmul.f32 %v1001, 0.5
      %v1034 = vmul.f32 %v1002, 0.5
      %v1035 = vmul.f32 %v1003, 0.5
      %v1036 = vmul.f32 %v1004, 0.5
      %v1037 = vmul.f32 %v1005, 0.5
      %v1038 = vmul.f32 %v1006, 0.5
      %v1039 = vmul.f32 %v1007, 0.5
      %v1040 = vmul.f32 %v976, 0.70710677
      %v1041 = vmul.f32 %v977, 0.70710677
      %v1042 = vmul.f32 %v978, 0.70710677
      %v1043 = vmul.f32 %v979, 0.70710677
      %v1044 = vmul.f32 %v980, 0.70710677
      %v1045 = vmul.f32 %v981, 0.70710677
      %v1046 = vmul.f32 %v982, 0.70710677
      %v1047 = vmul.f32 %v983, 0.70710677
      %v1048 = vmul.f32 %v984, 0.70710677
      %v1049 = vmul.f32 %v985, 0.70710677
      %v1050 = vmul.f32 %v986, 0.70710677
      %v1051 = vmul.f32 %v987, 0.70710677
      %v1052 = vmul.f32 %v988, 0.70710677
      %v1053 = vmul.f32 %v989, 0.70710677
      %v1054 = vmul.f32 %v990, 0.70710677
      %v1055 = vmul.f32 %v991, 0.70710677
      %v1056 = vmul.f32 %v992, 0.70710677
      %v1057 = vmul.f32 %v993, 0.70710677
      %v1058 = vmul.f32 %v994, 0.70710677
      %v1059 = vmul.f32 %v995, 0.70710677
      %v1060 = vmul.f32 %v996, 0.70710677
      %v1061 = vmul.f32 %v997, 0.70710677
      %v1062 = vmul.f32 %v998, 0.70710677
      %v1063 = vmul.f32 %v999, 0.70710677
      %v1064 = vmul.f32 %v1000, 0.70710677
      %v1065 = vmul.f32 %v1001, 0.70710677
      %v1066 = vmul.f32 %v1002, 0.70710677
      %v1067 = vmul.f32 %v1003, 0.70710677
      %v1068 = vmul.f32 %v1004, 0.70710677
      %v1069 = vmul.f32 %v1005, 0.70710677
      %v1070 = vmul.f32 %v1006, 0.70710677
      %v1071 = vmul.f32 %v1007, 0.70710677
      %v1072 = verf.f32.pop %v1040
      %v1073 = verf.f32.pop %v1041
      %v1074 = verf.f32.pop %v1042
      %v1075 = verf.f32.pop %v1043
      %v1076 = verf.f32.pop %v1044
      %v1077 = verf.f32.pop %v1045
      %v1078 = verf.f32.pop %v1046
      %v1079 = verf.f32.pop %v1047
      %v1080 = verf.f32.pop %v1048
      %v1081 = verf.f32.pop %v1049
      %v1082 = verf.f32.pop %v1050
      %v1083 = verf.f32.pop %v1051
      %v1084 = verf.f32.pop %v1052
      %v1085 = verf.f32.pop %v1053
      %v1086 = verf.f32.pop %v1054
      %v1087 = verf.f32.pop %v1055
      %v1088 = verf.f32.pop %v1056
      %v1089 = verf.f32.pop %v1057
      %v1090 = verf.f32.pop %v1058
      %v1091 = verf.f32.pop %v1059
      %v1092 = verf.f32.pop %v1060
      %v1093 = verf.f32.pop %v1061
      %v1094 = verf.f32.pop %v1062
      %v1095 = verf.f32.pop %v1063
      %v1096 = verf.f32.pop %v1064
      %v1097 = verf.f32.pop %v1065
      %v1098 = verf.f32.pop %v1066
      %v1099 = verf.f32.pop %v1067
      %v1100 = verf.f32.pop %v1068
      %v1101 = verf.f32.pop %v1069
      %v1102 = verf.f32.pop %v1070
      %v1103 = verf.f32.pop %v1071
      %v1104 = vadd.f32 %v1072, 1.0
      %v1105 = vadd.f32 %v1073, 1.0
      %v1106 = vadd.f32 %v1074, 1.0
      %v1107 = vadd.f32 %v1075, 1.0
      %v1108 = vadd.f32 %v1076, 1.0
      %v1109 = vadd.f32 %v1077, 1.0
      %v1110 = vadd.f32 %v1078, 1.0
      %v1111 = vadd.f32 %v1079, 1.0
      %v1112 = vadd.f32 %v1080, 1.0
      %v1113 = vadd.f32 %v1081, 1.0
      %v1114 = vadd.f32 %v1082, 1.0
      %v1115 = vadd.f32 %v1083, 1.0
      %v1116 = vadd.f32 %v1084, 1.0
      %v1117 = vadd.f32 %v1085, 1.0
      %v1118 = vadd.f32 %v1086, 1.0
      %v1119 = vadd.f32 %v1087, 1.0
      %v1120 = vadd.f32 %v1088, 1.0
      %v1121 = vadd.f32 %v1089, 1.0
      %v1122 = vadd.f32 %v1090, 1.0
      %v1123 = vadd.f32 %v1091, 1.0
      %v1124 = vadd.f32 %v1092, 1.0
      %v1125 = vadd.f32 %v1093, 1.0
      %v1126 = vadd.f32 %v1094, 1.0
      %v1127 = vadd.f32 %v1095, 1.0
      %v1128 = vadd.f32 %v1096, 1.0
      %v1129 = vadd.f32 %v1097, 1.0
      %v1130 = vadd.f32 %v1098, 1.0
      %v1131 = vadd.f32 %v1099, 1.0
      %v1132 = vadd.f32 %v1100, 1.0
      %v1133 = vadd.f32 %v1101, 1.0
      %v1134 = vadd.f32 %v1102, 1.0
      %v1135 = vadd.f32 %v1103, 1.0
      %v1136 = vmul.f32 %v1008, %v1104
      %v1137 = vmul.f32 %v1009, %v1105
      %v1138 = vmul.f32 %v1010, %v1106
      %v1139 = vmul.f32 %v1011, %v1107
      %v1140 = vmul.f32 %v1012, %v1108
      %v1141 = vmul.f32 %v1013, %v1109
      %v1142 = vmul.f32 %v1014, %v1110
      %v1143 = vmul.f32 %v1015, %v1111
      %v1144 = vmul.f32 %v1016, %v1112
      %v1145 = vmul.f32 %v1017, %v1113
      %v1146 = vmul.f32 %v1018, %v1114
      %v1147 = vmul.f32 %v1019, %v1115
      %v1148 = vmul.f32 %v1020, %v1116
      %v1149 = vmul.f32 %v1021, %v1117
      %v1150 = vmul.f32 %v1022, %v1118
      %v1151 = vmul.f32 %v1023, %v1119
      %v1152 = vmul.f32 %v1024, %v1120
      %v1153 = vmul.f32 %v1025, %v1121
      %v1154 = vmul.f32 %v1026, %v1122
      %v1155 = vmul.f32 %v1027, %v1123
      %v1156 = vmul.f32 %v1028, %v1124
      %v1157 = vmul.f32 %v1029, %v1125
      %v1158 = vmul.f32 %v1030, %v1126
      %v1159 = vmul.f32 %v1031, %v1127
      %v1160 = vmul.f32 %v1032, %v1128
      %v1161 = vmul.f32 %v1033, %v1129
      %v1162 = vmul.f32 %v1034, %v1130
      %v1163 = vmul.f32 %v1035, %v1131
      %v1164 = vmul.f32 %v1036, %v1132
      %v1165 = vmul.f32 %v1037, %v1133
      %v1166 = vmul.f32 %v1038, %v1134
      %v1167 = vmul.f32 %v1039, %v1135
      %v1168 = vld [vmem:[%s475] sm:$0xff]
      %v1169 = vld [vmem:[%s475 + $0x8] sm:$0xff]
      %v1170 = vld [vmem:[%s475 + $0x10] sm:$0xff]
      %v1171 = vld [vmem:[%s475 + $0x18] sm:$0xff]
      %v1172 = vld [vmem:[%s475 + $0x20] sm:$0xff]
      %v1173 = vld [vmem:[%s475 + $0x28] sm:$0xff]
      %v1174 = vld [vmem:[%s475 + $0x30] sm:$0xff]
      %v1175 = vld [vmem:[%s475 + $0x38] sm:$0xff]
      %v1176 = vld [vmem:[%s475 + $0x40] sm:$0xff]
      %v1177 = vld [vmem:[%s475 + $0x48] sm:$0xff]
      %v1178 = vld [vmem:[%s475 + $0x50] sm:$0xff]
      %v1179 = vld [vmem:[%s475 + $0x58] sm:$0xff]
      %v1180 = vld [vmem:[%s475 + $0x60] sm:$0xff]
      %v1181 = vld [vmem:[%s475 + $0x68] sm:$0xff]
      %v1182 = vld [vmem:[%s475 + $0x70] sm:$0xff]
      %v1183 = vld [vmem:[%s475 + $0x78] sm:$0xff]
      %v1184 = vld [vmem:[%s463] sm:$0xff]
      %v1185 = vld [vmem:[%s463 + $0x8] sm:$0xff]
      %v1186 = vld [vmem:[%s463 + $0x10] sm:$0xff]
      %v1187 = vld [vmem:[%s463 + $0x18] sm:$0xff]
      %v1188 = vld [vmem:[%s463 + $0x20] sm:$0xff]
      %v1189 = vld [vmem:[%s463 + $0x28] sm:$0xff]
      %v1190 = vld [vmem:[%s463 + $0x30] sm:$0xff]
      %v1191 = vld [vmem:[%s463 + $0x38] sm:$0xff]
      %v1192 = vld [vmem:[%s463 + $0x40] sm:$0xff]
      %v1193 = vld [vmem:[%s463 + $0x48] sm:$0xff]
      %v1194 = vld [vmem:[%s463 + $0x50] sm:$0xff]
      %v1195 = vld [vmem:[%s463 + $0x58] sm:$0xff]
      %v1196 = vld [vmem:[%s463 + $0x60] sm:$0xff]
      %v1197 = vld [vmem:[%s463 + $0x68] sm:$0xff]
      %v1198 = vld [vmem:[%s463 + $0x70] sm:$0xff]
      %v1199 = vld [vmem:[%s463 + $0x78] sm:$0xff]
      %v1200 = vld [vmem:[%s463 + $0x80] sm:$0xff]
      %v1201 = vld [vmem:[%s463 + $0x88] sm:$0xff]
      %v1202 = vld [vmem:[%s463 + $0x90] sm:$0xff]
      %v1203 = vld [vmem:[%s463 + $0x98] sm:$0xff]
      %v1204 = vld [vmem:[%s463 + $0xa0] sm:$0xff]
      %v1205 = vld [vmem:[%s463 + $0xa8] sm:$0xff]
      %v1206 = vld [vmem:[%s463 + $0xb0] sm:$0xff]
      %v1207 = vld [vmem:[%s463 + $0xb8] sm:$0xff]
      %v1208 = vld [vmem:[%s463 + $0xc0] sm:$0xff]
      %v1209 = vld [vmem:[%s463 + $0xc8] sm:$0xff]
      %v1210 = vld [vmem:[%s463 + $0xd0] sm:$0xff]
      %v1211 = vld [vmem:[%s463 + $0xd8] sm:$0xff]
      %v1212 = vld [vmem:[%s463 + $0xe0] sm:$0xff]
      %v1213 = vld [vmem:[%s463 + $0xe8] sm:$0xff]
      %v1214 = vld [vmem:[%s463 + $0xf0] sm:$0xff]
      %v1215 = vld [vmem:[%s463 + $0xf8] sm:$0xff]
      %1216 = vmatprep.subr.mxu0 0.0
      %1217 = vmatpush1.msra.mxu0 %v1199
      %1218 = vmatprep.subr.mxu0 0.0
      %1219 = vmatpush1.msra.mxu0 %v1198
      %1220 = vmatprep.subr.mxu0 0.0
      %1221 = vmatpush1.msra.mxu0 %v1197
      %1222 = vmatprep.subr.mxu0 0.0
      %1223 = vmatpush1.msra.mxu0 %v1196
      %1224 = vmatprep.subr.mxu0 0.0
      %1225 = vmatpush1.msra.mxu0 %v1195
      %1226 = vmatprep.subr.mxu0 0.0
      %1227 = vmatpush1.msra.mxu0 %v1194
      %1228 = vmatprep.subr.mxu0 0.0
      %1229 = vmatpush1.msra.mxu0 %v1193
      %1230 = vmatprep.subr.mxu0 0.0
      %1231 = vmatpush1.msra.mxu0 %v1192
      %1232 = vmatprep.subr.mxu0 0.0
      %1233 = vmatpush1.msra.mxu0 %v1191
      %1234 = vmatprep.subr.mxu0 0.0
      %1235 = vmatpush1.msra.mxu0 %v1190
      %1236 = vmatprep.subr.mxu0 0.0
      %1237 = vmatpush1.msra.mxu0 %v1189
      %1238 = vmatprep.subr.mxu0 0.0
      %1239 = vmatpush1.msra.mxu0 %v1188
      %1240 = vmatprep.subr.mxu0 0.0
      %1241 = vmatpush1.msra.mxu0 %v1187
      %1242 = vmatprep.subr.mxu0 0.0
      %1243 = vmatpush1.msra.mxu0 %v1186
      %1244 = vmatprep.subr.mxu0 0.0
      %1245 = vmatpush1.msra.mxu0 %v1185
      %1246 = vmatprep.subr.mxu0 0.0
      %1247 = vmatpush1.msra.mxu0 %v1184
      %1248 = vmatprep.subr.mxu0 0.0
      %1249 = vmatpush2.msra.mxu0 %v1215
      %1250 = vmatprep.subr.mxu0 0.0
      %1251 = vmatpush2.msra.mxu0 %v1214
      %1252 = vmatprep.subr.mxu0 0.0
      %1253 = vmatpush2.msra.mxu0 %v1213
      %1254 = vmatprep.subr.mxu0 0.0
      %1255 = vmatpush2.msra.mxu0 %v1212
      %1256 = vmatprep.subr.mxu0 0.0
      %1257 = vmatpush2.msra.mxu0 %v1211
      %1258 = vmatprep.subr.mxu0 0.0
      %1259 = vmatpush2.msra.mxu0 %v1210
      %1260 = vmatprep.subr.mxu0 0.0
      %1261 = vmatpush2.msra.mxu0 %v1209
      %1262 = vmatprep.subr.mxu0 0.0
      %1263 = vmatpush2.msra.mxu0 %v1208
      %1264 = vmatprep.subr.mxu0 0.0
      %1265 = vmatpush2.msra.mxu0 %v1207
      %1266 = vmatprep.subr.mxu0 0.0
      %1267 = vmatpush2.msra.mxu0 %v1206
      %1268 = vmatprep.subr.mxu0 0.0
      %1269 = vmatpush2.msra.mxu0 %v1205
      %1270 = vmatprep.subr.mxu0 0.0
      %1271 = vmatpush2.msra.mxu0 %v1204
      %1272 = vmatprep.subr.mxu0 0.0
      %1273 = vmatpush2.msra.mxu0 %v1203
      %1274 = vmatprep.subr.mxu0 0.0
      %1275 = vmatpush2.msra.mxu0 %v1202
      %1276 = vmatprep.subr.mxu0 0.0
      %1277 = vmatpush2.msra.mxu0 %v1201
      %1278 = vmatprep.subr.mxu0 0.0
      %1279 = vmatpush2.msra.mxu0 %v1200
      %1280 = vmatprep.mubr.f32.mxu0 %v1137
      %1281 = vmatmul.mubr.f32.gmra.mxu0 %v1136
      %v1282 = vpop.f32.mrf.mxu0
      %v1283 = vadd.f32 0.0, %v1282
      %v1284 = vpop.f32.mrf.mxu0
      %1285 = vmatprep.mubr.f32.mxu0 %v1139
      %1286 = vmatmul.mubr.f32.gmra.mxu0 %v1138
      %v1287 = vpop.f32.mrf.mxu0
      %v1288 = vadd.f32 0.0, %v1287
      %v1289 = vpop.f32.mrf.mxu0
      %1290 = vmatprep.mubr.f32.mxu0 %v1141
      %1291 = vmatmul.mubr.f32.gmra.mxu0 %v1140
      %v1292 = vpop.f32.mrf.mxu0
      %v1293 = vadd.f32 0.0, %v1292
      %v1294 = vpop.f32.mrf.mxu0
      %1295 = vmatprep.mubr.f32.mxu0 %v1143
      %1296 = vmatmul.mubr.f32.gmra.mxu0 %v1142
      %v1297 = vpop.f32.mrf.mxu0
      %v1298 = vadd.f32 0.0, %v1297
      %v1299 = vpop.f32.mrf.mxu0
      %1300 = vmatprep.mubr.f32.mxu0 %v1145
      %1301 = vmatmul.mubr.f32.gmra.mxu0 %v1144
      %v1302 = vpop.f32.mrf.mxu0
      %v1303 = vadd.f32 0.0, %v1302
      %v1304 = vpop.f32.mrf.mxu0
      %1305 = vmatprep.mubr.f32.mxu0 %v1147
      %1306 = vmatmul.mubr.f32.gmra.mxu0 %v1146
      %v1307 = vpop.f32.mrf.mxu0
      %v1308 = vadd.f32 0.0, %v1307
      %v1309 = vpop.f32.mrf.mxu0
      %1310 = vmatprep.mubr.f32.mxu0 %v1149
      %1311 = vmatmul.mubr.f32.gmra.mxu0 %v1148
      %v1312 = vpop.f32.mrf.mxu0
      %v1313 = vadd.f32 0.0, %v1312
      %v1314 = vpop.f32.mrf.mxu0
      %1315 = vmatprep.mubr.f32.mxu0 %v1151
      %1316 = vmatmul.mubr.f32.gmra.mxu0 %v1150
      %v1317 = vpop.f32.mrf.mxu0
      %v1318 = vadd.f32 0.0, %v1317
      %v1319 = vpop.f32.mrf.mxu0
      %1320 = vmatprep.mubr.f32.mxu0 %v1153
      %1321 = vmatmul.mubr.f32.gmra.mxu0 %v1152
      %v1322 = vpop.f32.mrf.mxu0
      %v1323 = vadd.f32 0.0, %v1322
      %v1324 = vpop.f32.mrf.mxu0
      %1325 = vmatprep.mubr.f32.mxu0 %v1155
      %1326 = vmatmul.mubr.f32.gmra.mxu0 %v1154
      %v1327 = vpop.f32.mrf.mxu0
      %v1328 = vadd.f32 0.0, %v1327
      %v1329 = vpop.f32.mrf.mxu0
      %1330 = vmatprep.mubr.f32.mxu0 %v1157
      %1331 = vmatmul.mubr.f32.gmra.mxu0 %v1156
      %v1332 = vpop.f32.mrf.mxu0
      %v1333 = vadd.f32 0.0, %v1332
      %v1334 = vpop.f32.mrf.mxu0
      %1335 = vmatprep.mubr.f32.mxu0 %v1159
      %1336 = vmatmul.mubr.f32.gmra.mxu0 %v1158
      %v1337 = vpop.f32.mrf.mxu0
      %v1338 = vadd.f32 0.0, %v1337
      %v1339 = vpop.f32.mrf.mxu0
      %1340 = vmatprep.mubr.f32.mxu0 %v1161
      %1341 = vmatmul.mubr.f32.gmra.mxu0 %v1160
      %v1342 = vpop.f32.mrf.mxu0
      %v1343 = vadd.f32 0.0, %v1342
      %v1344 = vpop.f32.mrf.mxu0
      %1345 = vmatprep.mubr.f32.mxu0 %v1163
      %1346 = vmatmul.mubr.f32.gmra.mxu0 %v1162
      %v1347 = vpop.f32.mrf.mxu0
      %v1348 = vadd.f32 0.0, %v1347
      %v1349 = vpop.f32.mrf.mxu0
      %1350 = vmatprep.mubr.f32.mxu0 %v1165
      %1351 = vmatmul.mubr.f32.gmra.mxu0 %v1164
      %v1352 = vpop.f32.mrf.mxu0
      %v1353 = vadd.f32 0.0, %v1352
      %v1354 = vpop.f32.mrf.mxu0
      %1355 = vmatprep.mubr.f32.mxu0 %v1167
      %1356 = vmatmul.mubr.f32.gmra.mxu0 %v1166
      %v1357 = vpop.f32.mrf.mxu0
      %v1358 = vadd.f32 0.0, %v1357
      %v1359 = vpop.f32.mrf.mxu0
      %1360 = vdwg.mxu0
      %v1361 = vadd.f32 %v1168, %v1283
      %v1362 = vadd.f32 %v1169, %v1288
      %v1363 = vadd.f32 %v1170, %v1293
      %v1364 = vadd.f32 %v1171, %v1298
      %v1365 = vadd.f32 %v1172, %v1303
      %v1366 = vadd.f32 %v1173, %v1308
      %v1367 = vadd.f32 %v1174, %v1313
      %v1368 = vadd.f32 %v1175, %v1318
      %v1369 = vadd.f32 %v1176, %v1323
      %v1370 = vadd.f32 %v1177, %v1328
      %v1371 = vadd.f32 %v1178, %v1333
      %v1372 = vadd.f32 %v1179, %v1338
      %v1373 = vadd.f32 %v1180, %v1343
      %v1374 = vadd.f32 %v1181, %v1348
      %v1375 = vadd.f32 %v1182, %v1353
      %v1376 = vadd.f32 %v1183, %v1358
      %1377 = vst [vmem:[%s475] sm:$0xff] %v1361
      %1378 = vst [vmem:[%s475 + $0x8] sm:$0xff] %v1362
      %1379 = vst [vmem:[%s475 + $0x10] sm:$0xff] %v1363
      %1380 = vst [vmem:[%s475 + $0x18] sm:$0xff] %v1364
      %1381 = vst [vmem:[%s475 + $0x20] sm:$0xff] %v1365
      %1382 = vst [vmem:[%s475 + $0x28] sm:$0xff] %v1366
      %1383 = vst [vmem:[%s475 + $0x30] sm:$0xff] %v1367
      %1384 = vst [vmem:[%s475 + $0x38] sm:$0xff] %v1368
      %1385 = vst [vmem:[%s475 + $0x40] sm:$0xff] %v1369
      %1386 = vst [vmem:[%s475 + $0x48] sm:$0xff] %v1370
      %1387 = vst [vmem:[%s475 + $0x50] sm:$0xff] %v1371
      %1388 = vst [vmem:[%s475 + $0x58] sm:$0xff] %v1372
      %1389 = vst [vmem:[%s475 + $0x60] sm:$0xff] %v1373
      %1390 = vst [vmem:[%s475 + $0x68] sm:$0xff] %v1374
      %1391 = vst [vmem:[%s475 + $0x70] sm:$0xff] %v1375
      %1392 = vst [vmem:[%s475 + $0x78] sm:$0xff] %v1376
      %v1393 = vld [vmem:[#allocation2] sm:$0xff]
      %v1394 = vld [vmem:[#allocation2 + $0x8] sm:$0xff]
      %v1395 = vld [vmem:[#allocation2 + $0x10] sm:$0xff]
      %v1396 = vld [vmem:[#allocation2 + $0x18] sm:$0xff]
      %v1397 = vld [vmem:[#allocation2 + $0x20] sm:$0xff]
      %v1398 = vld [vmem:[#allocation2 + $0x28] sm:$0xff]
      %v1399 = vld [vmem:[#allocation2 + $0x30] sm:$0xff]
      %v1400 = vld [vmem:[#allocation2 + $0x38] sm:$0xff]
      %v1401 = vld [vmem:[#allocation2 + $0x40] sm:$0xff]
      %v1402 = vld [vmem:[#allocation2 + $0x48] sm:$0xff]
      %v1403 = vld [vmem:[#allocation2 + $0x50] sm:$0xff]
      %v1404 = vld [vmem:[#allocation2 + $0x58] sm:$0xff]
      %v1405 = vld [vmem:[#allocation2 + $0x60] sm:$0xff]
      %v1406 = vld [vmem:[#allocation2 + $0x68] sm:$0xff]
      %v1407 = vld [vmem:[#allocation2 + $0x70] sm:$0xff]
      %v1408 = vld [vmem:[#allocation2 + $0x78] sm:$0xff]
      %v1409 = vld [vmem:[%s469] sm:$0xff]
      %v1410 = vld [vmem:[%s469 + $0x8] sm:$0xff]
      %v1411 = vld [vmem:[%s469 + $0x10] sm:$0xff]
      %v1412 = vld [vmem:[%s469 + $0x18] sm:$0xff]
      %v1413 = vld [vmem:[%s469 + $0x20] sm:$0xff]
      %v1414 = vld [vmem:[%s469 + $0x28] sm:$0xff]
      %v1415 = vld [vmem:[%s469 + $0x30] sm:$0xff]
      %v1416 = vld [vmem:[%s469 + $0x38] sm:$0xff]
      %v1417 = vld [vmem:[%s469 + $0x40] sm:$0xff]
      %v1418 = vld [vmem:[%s469 + $0x48] sm:$0xff]
      %v1419 = vld [vmem:[%s469 + $0x50] sm:$0xff]
      %v1420 = vld [vmem:[%s469 + $0x58] sm:$0xff]
      %v1421 = vld [vmem:[%s469 + $0x60] sm:$0xff]
      %v1422 = vld [vmem:[%s469 + $0x68] sm:$0xff]
      %v1423 = vld [vmem:[%s469 + $0x70] sm:$0xff]
      %v1424 = vld [vmem:[%s469 + $0x78] sm:$0xff]
      %v1425 = vld [vmem:[%s469 + $0x80] sm:$0xff]
      %v1426 = vld [vmem:[%s469 + $0x88] sm:$0xff]
      %v1427 = vld [vmem:[%s469 + $0x90] sm:$0xff]
      %v1428 = vld [vmem:[%s469 + $0x98] sm:$0xff]
      %v1429 = vld [vmem:[%s469 + $0xa0] sm:$0xff]
      %v1430 = vld [vmem:[%s469 + $0xa8] sm:$0xff]
      %v1431 = vld [vmem:[%s469 + $0xb0] sm:$0xff]
      %v1432 = vld [vmem:[%s469 + $0xb8] sm:$0xff]
      %v1433 = vld [vmem:[%s469 + $0xc0] sm:$0xff]
      %v1434 = vld [vmem:[%s469 + $0xc8] sm:$0xff]
      %v1435 = vld [vmem:[%s469 + $0xd0] sm:$0xff]
      %v1436 = vld [vmem:[%s469 + $0xd8] sm:$0xff]
      %v1437 = vld [vmem:[%s469 + $0xe0] sm:$0xff]
      %v1438 = vld [vmem:[%s469 + $0xe8] sm:$0xff]
      %v1439 = vld [vmem:[%s469 + $0xf0] sm:$0xff]
      %v1440 = vld [vmem:[%s469 + $0xf8] sm:$0xff]
      %1441 = vmatprep.subr.mxu0 0.0
      %1442 = vmatpush1.msra.mxu0 %v1424
      %1443 = vmatprep.subr.mxu0 0.0
      %1444 = vmatpush1.msra.mxu0 %v1423
      %1445 = vmatprep.subr.mxu0 0.0
      %1446 = vmatpush1.msra.mxu0 %v1422
      %1447 = vmatprep.subr.mxu0 0.0
      %1448 = vmatpush1.msra.mxu0 %v1421
      %1449 = vmatprep.subr.mxu0 0.0
      %1450 = vmatpush1.msra.mxu0 %v1420
      %1451 = vmatprep.subr.mxu0 0.0
      %1452 = vmatpush1.msra.mxu0 %v1419
      %1453 = vmatprep.subr.mxu0 0.0
      %1454 = vmatpush1.msra.mxu0 %v1418
      %1455 = vmatprep.subr.mxu0 0.0
      %1456 = vmatpush1.msra.mxu0 %v1417
      %1457 = vmatprep.subr.mxu0 0.0
      %1458 = vmatpush1.msra.mxu0 %v1416
      %1459 = vmatprep.subr.mxu0 0.0
      %1460 = vmatpush1.msra.mxu0 %v1415
      %1461 = vmatprep.subr.mxu0 0.0
      %1462 = vmatpush1.msra.mxu0 %v1414
      %1463 = vmatprep.subr.mxu0 0.0
      %1464 = vmatpush1.msra.mxu0 %v1413
      %1465 = vmatprep.subr.mxu0 0.0
      %1466 = vmatpush1.msra.mxu0 %v1412
      %1467 = vmatprep.subr.mxu0 0.0
      %1468 = vmatpush1.msra.mxu0 %v1411
      %1469 = vmatprep.subr.mxu0 0.0
      %1470 = vmatpush1.msra.mxu0 %v1410
      %1471 = vmatprep.subr.mxu0 0.0
      %1472 = vmatpush1.msra.mxu0 %v1409
      %1473 = vmatprep.subr.mxu0 0.0
      %1474 = vmatpush2.msra.mxu0 %v1440
      %1475 = vmatprep.subr.mxu0 0.0
      %1476 = vmatpush2.msra.mxu0 %v1439
      %1477 = vmatprep.subr.mxu0 0.0
      %1478 = vmatpush2.msra.mxu0 %v1438
      %1479 = vmatprep.subr.mxu0 0.0
      %1480 = vmatpush2.msra.mxu0 %v1437
      %1481 = vmatprep.subr.mxu0 0.0
      %1482 = vmatpush2.msra.mxu0 %v1436
      %1483 = vmatprep.subr.mxu0 0.0
      %1484 = vmatpush2.msra.mxu0 %v1435
      %1485 = vmatprep.subr.mxu0 0.0
      %1486 = vmatpush2.msra.mxu0 %v1434
      %1487 = vmatprep.subr.mxu0 0.0
      %1488 = vmatpush2.msra.mxu0 %v1433
      %1489 = vmatprep.subr.mxu0 0.0
      %1490 = vmatpush2.msra.mxu0 %v1432
      %1491 = vmatprep.subr.mxu0 0.0
      %1492 = vmatpush2.msra.mxu0 %v1431
      %1493 = vmatprep.subr.mxu0 0.0
      %1494 = vmatpush2.msra.mxu0 %v1430
      %1495 = vmatprep.subr.mxu0 0.0
      %1496 = vmatpush2.msra.mxu0 %v1429
      %1497 = vmatprep.subr.mxu0 0.0
      %1498 = vmatpush2.msra.mxu0 %v1428
      %1499 = vmatprep.subr.mxu0 0.0
      %1500 = vmatpush2.msra.mxu0 %v1427
      %1501 = vmatprep.subr.mxu0 0.0
      %1502 = vmatpush2.msra.mxu0 %v1426
      %1503 = vmatprep.subr.mxu0 0.0
      %1504 = vmatpush2.msra.mxu0 %v1425
      %1505 = vmatprep.mubr.f32.mxu0 %v1137
      %1506 = vmatmul.mubr.f32.gmra.mxu0 %v1136
      %v1507 = vpop.f32.mrf.mxu0
      %v1508 = vadd.f32 0.0, %v1507
      %v1509 = vpop.f32.mrf.mxu0
      %1510 = vmatprep.mubr.f32.mxu0 %v1139
      %1511 = vmatmul.mubr.f32.gmra.mxu0 %v1138
      %v1512 = vpop.f32.mrf.mxu0
      %v1513 = vadd.f32 0.0, %v1512
      %v1514 = vpop.f32.mrf.mxu0
      %1515 = vmatprep.mubr.f32.mxu0 %v1141
      %1516 = vmatmul.mubr.f32.gmra.mxu0 %v1140
      %v1517 = vpop.f32.mrf.mxu0
      %v1518 = vadd.f32 0.0, %v1517
      %v1519 = vpop.f32.mrf.mxu0
      %1520 = vmatprep.mubr.f32.mxu0 %v1143
      %1521 = vmatmul.mubr.f32.gmra.mxu0 %v1142
      %v1522 = vpop.f32.mrf.mxu0
      %v1523 = vadd.f32 0.0, %v1522
      %v1524 = vpop.f32.mrf.mxu0
      %1525 = vmatprep.mubr.f32.mxu0 %v1145
      %1526 = vmatmul.mubr.f32.gmra.mxu0 %v1144
      %v1527 = vpop.f32.mrf.mxu0
      %v1528 = vadd.f32 0.0, %v1527
      %v1529 = vpop.f32.mrf.mxu0
      %1530 = vmatprep.mubr.f32.mxu0 %v1147
      %1531 = vmatmul.mubr.f32.gmra.mxu0 %v1146
      %v1532 = vpop.f32.mrf.mxu0
      %v1533 = vadd.f32 0.0, %v1532
      %v1534 = vpop.f32.mrf.mxu0
      %1535 = vmatprep.mubr.f32.mxu0 %v1149
      %1536 = vmatmul.mubr.f32.gmra.mxu0 %v1148
      %v1537 = vpop.f32.mrf.mxu0
      %v1538 = vadd.f32 0.0, %v1537
      %v1539 = vpop.f32.mrf.mxu0
      %1540 = vmatprep.mubr.f32.mxu0 %v1151
      %1541 = vmatmul.mubr.f32.gmra.mxu0 %v1150
      %v1542 = vpop.f32.mrf.mxu0
      %v1543 = vadd.f32 0.0, %v1542
      %v1544 = vpop.f32.mrf.mxu0
      %1545 = vmatprep.mubr.f32.mxu0 %v1153
      %1546 = vmatmul.mubr.f32.gmra.mxu0 %v1152
      %v1547 = vpop.f32.mrf.mxu0
      %v1548 = vadd.f32 0.0, %v1547
      %v1549 = vpop.f32.mrf.mxu0
      %1550 = vmatprep.mubr.f32.mxu0 %v1155
      %1551 = vmatmul.mubr.f32.gmra.mxu0 %v1154
      %v1552 = vpop.f32.mrf.mxu0
      %v1553 = vadd.f32 0.0, %v1552
      %v1554 = vpop.f32.mrf.mxu0
      %1555 = vmatprep.mubr.f32.mxu0 %v1157
      %1556 = vmatmul.mubr.f32.gmra.mxu0 %v1156
      %v1557 = vpop.f32.mrf.mxu0
      %v1558 = vadd.f32 0.0, %v1557
      %v1559 = vpop.f32.mrf.mxu0
      %1560 = vmatprep.mubr.f32.mxu0 %v1159
      %1561 = vmatmul.mubr.f32.gmra.mxu0 %v1158
      %v1562 = vpop.f32.mrf.mxu0
      %v1563 = vadd.f32 0.0, %v1562
      %v1564 = vpop.f32.mrf.mxu0
      %1565 = vmatprep.mubr.f32.mxu0 %v1161
      %1566 = vmatmul.mubr.f32.gmra.mxu0 %v1160
      %v1567 = vpop.f32.mrf.mxu0
      %v1568 = vadd.f32 0.0, %v1567
      %v1569 = vpop.f32.mrf.mxu0
      %1570 = vmatprep.mubr.f32.mxu0 %v1163
      %1571 = vmatmul.mubr.f32.gmra.mxu0 %v1162
      %v1572 = vpop.f32.mrf.mxu0
      %v1573 = vadd.f32 0.0, %v1572
      %v1574 = vpop.f32.mrf.mxu0
      %1575 = vmatprep.mubr.f32.mxu0 %v1165
      %1576 = vmatmul.mubr.f32.gmra.mxu0 %v1164
      %v1577 = vpop.f32.mrf.mxu0
      %v1578 = vadd.f32 0.0, %v1577
      %v1579 = vpop.f32.mrf.mxu0
      %1580 = vmatprep.mubr.f32.mxu0 %v1167
      %1581 = vmatmul.mubr.f32.gmra.mxu0 %v1166
      %v1582 = vpop.f32.mrf.mxu0
      %v1583 = vadd.f32 0.0, %v1582
      %v1584 = vpop.f32.mrf.mxu0
      %1585 = vdwg.mxu0
      %v1586 = vadd.f32 %v1393, %v1508
      %v1587 = vadd.f32 %v1394, %v1513
      %v1588 = vadd.f32 %v1395, %v1518
      %v1589 = vadd.f32 %v1396, %v1523
      %v1590 = vadd.f32 %v1397, %v1528
      %v1591 = vadd.f32 %v1398, %v1533
      %v1592 = vadd.f32 %v1399, %v1538
      %v1593 = vadd.f32 %v1400, %v1543
      %v1594 = vadd.f32 %v1401, %v1548
      %v1595 = vadd.f32 %v1402, %v1553
      %v1596 = vadd.f32 %v1403, %v1558
      %v1597 = vadd.f32 %v1404, %v1563
      %v1598 = vadd.f32 %v1405, %v1568
      %v1599 = vadd.f32 %v1406, %v1573
      %v1600 = vadd.f32 %v1407, %v1578
      %v1601 = vadd.f32 %v1408, %v1583
      %1602 = vst.msk [vmem:[#allocation2] sm:$0xff] %vm588, %v1586
      %1603 = vst.msk [vmem:[#allocation2 + $0x8] sm:$0xff] %vm588, %v1587
      %1604 = vst.msk [vmem:[#allocation2 + $0x10] sm:$0xff] %vm588, %v1588
      %1605 = vst.msk [vmem:[#allocation2 + $0x18] sm:$0xff] %vm588, %v1589
      %1606 = vst.msk [vmem:[#allocation2 + $0x20] sm:$0xff] %vm588, %v1590
      %1607 = vst.msk [vmem:[#allocation2 + $0x28] sm:$0xff] %vm588, %v1591
      %1608 = vst.msk [vmem:[#allocation2 + $0x30] sm:$0xff] %vm588, %v1592
      %1609 = vst.msk [vmem:[#allocation2 + $0x38] sm:$0xff] %vm588, %v1593
      %1610 = vst.msk [vmem:[#allocation2 + $0x40] sm:$0xff] %vm588, %v1594
      %1611 = vst.msk [vmem:[#allocation2 + $0x48] sm:$0xff] %vm588, %v1595
      %1612 = vst.msk [vmem:[#allocation2 + $0x50] sm:$0xff] %vm588, %v1596
      %1613 = vst.msk [vmem:[#allocation2 + $0x58] sm:$0xff] %vm588, %v1597
      %1614 = vst.msk [vmem:[#allocation2 + $0x60] sm:$0xff] %vm588, %v1598
      %1615 = vst.msk [vmem:[#allocation2 + $0x68] sm:$0xff] %vm588, %v1599
      %1616 = vst.msk [vmem:[#allocation2 + $0x70] sm:$0xff] %vm588, %v1600
      %1617 = vst.msk [vmem:[#allocation2 + $0x78] sm:$0xff] %vm588, %v1601
      %p1618 = scmp.eq.s32.totalorder %s25, 1
      // Predicated region
      $region61: #{lora_mlp_forward.1} parent=55 // pred_check
        %p1619 = pneg %p1618
      $region62: #{lora_mlp_forward.1} parent=55 // pred_check_branch
        %1621 = sbr.rel (%p1619) target = $region64
      $region63: #{lora_mlp_forward.1} parent=55 // pred_region
        %v1622 = vld [vmem:[#allocation2] sm:$0xff]
        %v1623 = vld [vmem:[#allocation2 + $0x8] sm:$0xff]
        %v1624 = vld [vmem:[#allocation2 + $0x10] sm:$0xff]
        %v1625 = vld [vmem:[#allocation2 + $0x18] sm:$0xff]
        %v1626 = vld [vmem:[#allocation2 + $0x20] sm:$0xff]
        %v1627 = vld [vmem:[#allocation2 + $0x28] sm:$0xff]
        %v1628 = vld [vmem:[#allocation2 + $0x30] sm:$0xff]
        %v1629 = vld [vmem:[#allocation2 + $0x38] sm:$0xff]
        %v1630 = vld [vmem:[#allocation2 + $0x40] sm:$0xff]
        %v1631 = vld [vmem:[#allocation2 + $0x48] sm:$0xff]
        %v1632 = vld [vmem:[#allocation2 + $0x50] sm:$0xff]
        %v1633 = vld [vmem:[#allocation2 + $0x58] sm:$0xff]
        %v1634 = vld [vmem:[#allocation2 + $0x60] sm:$0xff]
        %v1635 = vld [vmem:[#allocation2 + $0x68] sm:$0xff]
        %v1636 = vld [vmem:[#allocation2 + $0x70] sm:$0xff]
        %v1637 = vld [vmem:[#allocation2 + $0x78] sm:$0xff]
        %v1638 = vld [vmem:[%s8] sm:$0xf]
        %v1640 = vsel %vm588, %v1622, 0
        %v1643 = vsel %vm588, %v1623, 0
        %v1646 = vsel %vm588, %v1624, 0
        %v1649 = vsel %vm588, %v1625, 0
        %v1652 = vsel %vm588, %v1626, 0
        %v1655 = vsel %vm588, %v1627, 0
        %v1658 = vsel %vm588, %v1628, 0
        %v1661 = vsel %vm588, %v1629, 0
        %v1664 = vsel %vm588, %v1630, 0
        %v1667 = vsel %vm588, %v1631, 0
        %v1670 = vsel %vm588, %v1632, 0
        %v1673 = vsel %vm588, %v1633, 0
        %v1676 = vsel %vm588, %v1634, 0
        %v1679 = vsel %vm588, %v1635, 0
        %v1682 = vsel %vm588, %v1636, 0
        %v1685 = vsel %vm588, %v1637, 0
        %v1688 = vsel %vm637, %v1638, 0
        %1690 = vmatprep.subr.mxu0 0.0
        %1691 = vmatpush1.msra.mxu0 0.0
        %1692 = vmatprep.subr.mxu0 0.0
        %1693 = vmatpush1.msra.mxu0 0.0
        %1694 = vmatprep.subr.mxu0 0.0
        %1695 = vmatpush1.msra.mxu0 0.0
        %1696 = vmatprep.subr.mxu0 0.0
        %1697 = vmatpush1.msra.mxu0 0.0
        %1698 = vmatprep.subr.mxu0 0.0
        %1699 = vmatpush1.msra.mxu0 0.0
        %1700 = vmatprep.subr.mxu0 0.0
        %1701 = vmatpush1.msra.mxu0 0.0
        %1702 = vmatprep.subr.mxu0 0.0
        %1703 = vmatpush1.msra.mxu0 0.0
        %1704 = vmatprep.subr.mxu0 0.0
        %1705 = vmatpush1.msra.mxu0 0.0
        %1706 = vmatprep.subr.mxu0 0.0
        %1707 = vmatpush1.msra.mxu0 0.0
        %1708 = vmatprep.subr.mxu0 0.0
        %1709 = vmatpush1.msra.mxu0 0.0
        %1710 = vmatprep.subr.mxu0 0.0
        %1711 = vmatpush1.msra.mxu0 0.0
        %1712 = vmatprep.subr.mxu0 0.0
        %1713 = vmatpush1.msra.mxu0 0.0
        %1714 = vmatprep.subr.mxu0 0.0
        %1715 = vmatpush1.msra.mxu0 0.0
        %1716 = vmatprep.subr.mxu0 0.0
        %1717 = vmatpush1.msra.mxu0 0.0
        %1718 = vmatprep.subr.mxu0 0.0
        %1719 = vmatpush1.msra.mxu0 0.0
        %1720 = vmatprep.subr.mxu0 0.0
        %1721 = vmatpush1.msra.mxu0 %v1688
        %1722 = vmatprep.subr.mxu0 0.0
        %1723 = vmatpush2.msra.mxu0 0.0
        %1724 = vmatprep.subr.mxu0 0.0
        %1725 = vmatpush2.msra.mxu0 0.0
        %1726 = vmatprep.subr.mxu0 0.0
        %1727 = vmatpush2.msra.mxu0 0.0
        %1728 = vmatprep.subr.mxu0 0.0
        %1729 = vmatpush2.msra.mxu0 0.0
        %1730 = vmatprep.subr.mxu0 0.0
        %1731 = vmatpush2.msra.mxu0 0.0
        %1732 = vmatprep.subr.mxu0 0.0
        %1733 = vmatpush2.msra.mxu0 0.0
        %1734 = vmatprep.subr.mxu0 0.0
        %1735 = vmatpush2.msra.mxu0 0.0
        %1736 = vmatprep.subr.mxu0 0.0
        %1737 = vmatpush2.msra.mxu0 0.0
        %1738 = vmatprep.subr.mxu0 0.0
        %1739 = vmatpush2.msra.mxu0 0.0
        %1740 = vmatprep.subr.mxu0 0.0
        %1741 = vmatpush2.msra.mxu0 0.0
        %1742 = vmatprep.subr.mxu0 0.0
        %1743 = vmatpush2.msra.mxu0 0.0
        %1744 = vmatprep.subr.mxu0 0.0
        %1745 = vmatpush2.msra.mxu0 0.0
        %1746 = vmatprep.subr.mxu0 0.0
        %1747 = vmatpush2.msra.mxu0 0.0
        %1748 = vmatprep.subr.mxu0 0.0
        %1749 = vmatpush2.msra.mxu0 0.0
        %1750 = vmatprep.subr.mxu0 0.0
        %1751 = vmatpush2.msra.mxu0 0.0
        %1752 = vmatprep.subr.mxu0 0.0
        %1753 = vmatpush2.msra.mxu0 0.0
        %1754 = vmatprep.mubr.f32.mxu0 0.0
        %1755 = vmatmul.mubr.f32.gmra.mxu0 %v1640
        %v1756 = vpop.f32.mrf.mxu0
        %v1757 = vadd.f32 0.0, %v1756
        %v1758 = vpop.f32.mrf.mxu0
        %1759 = vmatprep.mubr.f32.mxu0 0.0
        %1760 = vmatmul.mubr.f32.gmra.mxu0 %v1643
        %v1761 = vpop.f32.mrf.mxu0
        %v1762 = vadd.f32 0.0, %v1761
        %v1763 = vpop.f32.mrf.mxu0
        %1764 = vmatprep.mubr.f32.mxu0 0.0
        %1765 = vmatmul.mubr.f32.gmra.mxu0 %v1646
        %v1766 = vpop.f32.mrf.mxu0
        %v1767 = vadd.f32 0.0, %v1766
        %v1768 = vpop.f32.mrf.mxu0
        %1769 = vmatprep.mubr.f32.mxu0 0.0
        %1770 = vmatmul.mubr.f32.gmra.mxu0 %v1649
        %v1771 = vpop.f32.mrf.mxu0
        %v1772 = vadd.f32 0.0, %v1771
        %v1773 = vpop.f32.mrf.mxu0
        %1774 = vmatprep.mubr.f32.mxu0 0.0
        %1775 = vmatmul.mubr.f32.gmra.mxu0 %v1652
        %v1776 = vpop.f32.mrf.mxu0
        %v1777 = vadd.f32 0.0, %v1776
        %v1778 = vpop.f32.mrf.mxu0
        %1779 = vmatprep.mubr.f32.mxu0 0.0
        %1780 = vmatmul.mubr.f32.gmra.mxu0 %v1655
        %v1781 = vpop.f32.mrf.mxu0
        %v1782 = vadd.f32 0.0, %v1781
        %v1783 = vpop.f32.mrf.mxu0
        %1784 = vmatprep.mubr.f32.mxu0 0.0
        %1785 = vmatmul.mubr.f32.gmra.mxu0 %v1658
        %v1786 = vpop.f32.mrf.mxu0
        %v1787 = vadd.f32 0.0, %v1786
        %v1788 = vpop.f32.mrf.mxu0
        %1789 = vmatprep.mubr.f32.mxu0 0.0
        %1790 = vmatmul.mubr.f32.gmra.mxu0 %v1661
        %v1791 = vpop.f32.mrf.mxu0
        %v1792 = vadd.f32 0.0, %v1791
        %v1793 = vpop.f32.mrf.mxu0
        %1794 = vmatprep.mubr.f32.mxu0 0.0
        %1795 = vmatmul.mubr.f32.gmra.mxu0 %v1664
        %v1796 = vpop.f32.mrf.mxu0
        %v1797 = vadd.f32 0.0, %v1796
        %v1798 = vpop.f32.mrf.mxu0
        %1799 = vmatprep.mubr.f32.mxu0 0.0
        %1800 = vmatmul.mubr.f32.gmra.mxu0 %v1667
        %v1801 = vpop.f32.mrf.mxu0
        %v1802 = vadd.f32 0.0, %v1801
        %v1803 = vpop.f32.mrf.mxu0
        %1804 = vmatprep.mubr.f32.mxu0 0.0
        %1805 = vmatmul.mubr.f32.gmra.mxu0 %v1670
        %v1806 = vpop.f32.mrf.mxu0
        %v1807 = vadd.f32 0.0, %v1806
        %v1808 = vpop.f32.mrf.mxu0
        %1809 = vmatprep.mubr.f32.mxu0 0.0
        %1810 = vmatmul.mubr.f32.gmra.mxu0 %v1673
        %v1811 = vpop.f32.mrf.mxu0
        %v1812 = vadd.f32 0.0, %v1811
        %v1813 = vpop.f32.mrf.mxu0
        %1814 = vmatprep.mubr.f32.mxu0 0.0
        %1815 = vmatmul.mubr.f32.gmra.mxu0 %v1676
        %v1816 = vpop.f32.mrf.mxu0
        %v1817 = vadd.f32 0.0, %v1816
        %v1818 = vpop.f32.mrf.mxu0
        %1819 = vmatprep.mubr.f32.mxu0 0.0
        %1820 = vmatmul.mubr.f32.gmra.mxu0 %v1679
        %v1821 = vpop.f32.mrf.mxu0
        %v1822 = vadd.f32 0.0, %v1821
        %v1823 = vpop.f32.mrf.mxu0
        %1824 = vmatprep.mubr.f32.mxu0 0.0
        %1825 = vmatmul.mubr.f32.gmra.mxu0 %v1682
        %v1826 = vpop.f32.mrf.mxu0
        %v1827 = vadd.f32 0.0, %v1826
        %v1828 = vpop.f32.mrf.mxu0
        %1829 = vmatprep.mubr.f32.mxu0 0.0
        %1830 = vmatmul.mubr.f32.gmra.mxu0 %v1685
        %v1831 = vpop.f32.mrf.mxu0
        %v1832 = vadd.f32 0.0, %v1831
        %v1833 = vpop.f32.mrf.mxu0
        %1834 = vdwg.mxu0
        %v1835 = vld [vmem:[%s475] sm:$0xff]
        %v1836 = vld [vmem:[%s475 + $0x8] sm:$0xff]
        %v1837 = vld [vmem:[%s475 + $0x10] sm:$0xff]
        %v1838 = vld [vmem:[%s475 + $0x18] sm:$0xff]
        %v1839 = vld [vmem:[%s475 + $0x20] sm:$0xff]
        %v1840 = vld [vmem:[%s475 + $0x28] sm:$0xff]
        %v1841 = vld [vmem:[%s475 + $0x30] sm:$0xff]
        %v1842 = vld [vmem:[%s475 + $0x38] sm:$0xff]
        %v1843 = vld [vmem:[%s475 + $0x40] sm:$0xff]
        %v1844 = vld [vmem:[%s475 + $0x48] sm:$0xff]
        %v1845 = vld [vmem:[%s475 + $0x50] sm:$0xff]
        %v1846 = vld [vmem:[%s475 + $0x58] sm:$0xff]
        %v1847 = vld [vmem:[%s475 + $0x60] sm:$0xff]
        %v1848 = vld [vmem:[%s475 + $0x68] sm:$0xff]
        %v1849 = vld [vmem:[%s475 + $0x70] sm:$0xff]
        %v1850 = vld [vmem:[%s475 + $0x78] sm:$0xff]
        %v1851 = vadd.f32 %v1835, %v1757
        %v1852 = vadd.f32 %v1836, %v1762
        %v1853 = vadd.f32 %v1837, %v1767
        %v1854 = vadd.f32 %v1838, %v1772
        %v1855 = vadd.f32 %v1839, %v1777
        %v1856 = vadd.f32 %v1840, %v1782
        %v1857 = vadd.f32 %v1841, %v1787
        %v1858 = vadd.f32 %v1842, %v1792
        %v1859 = vadd.f32 %v1843, %v1797
        %v1860 = vadd.f32 %v1844, %v1802
        %v1861 = vadd.f32 %v1845, %v1807
        %v1862 = vadd.f32 %v1846, %v1812
        %v1863 = vadd.f32 %v1847, %v1817
        %v1864 = vadd.f32 %v1848, %v1822
        %v1865 = vadd.f32 %v1849, %v1827
        %v1866 = vadd.f32 %v1850, %v1832
        %1867 = vst [vmem:[%s475] sm:$0xff] %v1851
        %1868 = vst [vmem:[%s475 + $0x8] sm:$0xff] %v1852
        %1869 = vst [vmem:[%s475 + $0x10] sm:$0xff] %v1853
        %1870 = vst [vmem:[%s475 + $0x18] sm:$0xff] %v1854
        %1871 = vst [vmem:[%s475 + $0x20] sm:$0xff] %v1855
        %1872 = vst [vmem:[%s475 + $0x28] sm:$0xff] %v1856
        %1873 = vst [vmem:[%s475 + $0x30] sm:$0xff] %v1857
        %1874 = vst [vmem:[%s475 + $0x38] sm:$0xff] %v1858
        %1875 = vst [vmem:[%s475 + $0x40] sm:$0xff] %v1859
        %1876 = vst [vmem:[%s475 + $0x48] sm:$0xff] %v1860
        %1877 = vst [vmem:[%s475 + $0x50] sm:$0xff] %v1861
        %1878 = vst [vmem:[%s475 + $0x58] sm:$0xff] %v1862
        %1879 = vst [vmem:[%s475 + $0x60] sm:$0xff] %v1863
        %1880 = vst [vmem:[%s475 + $0x68] sm:$0xff] %v1864
        %1881 = vst [vmem:[%s475 + $0x70] sm:$0xff] %v1865
        %1882 = vst [vmem:[%s475 + $0x78] sm:$0xff] %v1866
      $region64: #{lora_mlp_forward.1} parent=55 // pred_fallthru
        _
      %s1883 = smul.u32 16, %s24
      %p1884 = scmp.lt.s32.totalorder %s1883, 31
      %s1885 = scalar_select %p1884, %s1883, 31
      %s1886 = smul.addr %s1885, 8
      %s1887 = scalar_lea.vmem %s9, %s1886
      // Predicated region
      $region65: #{lora_mlp_forward.1} parent=55 // pred_check
        %p1888 = pneg %p274
      $region66: #{lora_mlp_forward.1} parent=55 // pred_check_branch
        %1890 = sbr.rel (%p1888) target = $region68
      $region67: #{lora_mlp_forward.1} parent=55 // pred_region
        %s1891 = smul.u32 16, %s24
      $region68: #{lora_mlp_forward.1} parent=55 // pred_fallthru
        _
    $region56: #{lora_mlp_forward.1} parent=5 // pred_fallthru
      _
    %p1892 = scmp.le.s32.totalorder 2, %s15
    // Predicated region
    $region69: #{lora_mlp_forward.1} parent=5 // pred_check
      %p1893 = pneg %p1892
    $region70: #{lora_mlp_forward.1} parent=5 // pred_check_branch
      %1895 = sbr.rel (%p1893) target = $region72
    $region71: #{lora_mlp_forward.1} parent=5 // pred_region
      %s1896 = ssub.s32 %s15, 2
      // Predicated region
      $region73: #{lora_mlp_forward.1} parent=71 // pred_check
        %p1897 = pneg %p280
      $region74: #{lora_mlp_forward.1} parent=71 // pred_check_branch
        %1899 = sbr.rel (%p1897) target = $region76
      $region75: #{lora_mlp_forward.1} parent=71 // pred_region
        %s1900 = smul.u32 16, %s26
        %p1901 = scmp.lt.s32.totalorder %s1900, 31
        %s1902 = scalar_select %p1901, %s1900, 31
        %s1903 = smul.addr %s1902, 8
        %s1904 = scalar_lea.vmem %s9, %s1903
      $region76: #{lora_mlp_forward.1} parent=71 // pred_fallthru
        _
    $region72: #{lora_mlp_forward.1} parent=5 // pred_fallthru
      _
  $region6: #{lora_mlp_forward.1} parent=0 // loop_footer
    %s19 = sadd.s32 1, %s15
  $region7: #{lora_mlp_forward.1} parent=0 // loop_footer_branch
    %14 = sbr.rel target = $region3
  $region8: #{lora_mlp_forward.1} parent=0 // loop_exit
    _

</llo_original>
